<compile_context>
chip_gen: v7x
topology: tpu7x:2x2x1
jax: 0.10.0
libtpu: 0.0.40
codegen_flags: <defaults>
</compile_context>

<pallas_src>
import jax
import jax.numpy as jnp
from jax.experimental import pallas as pl
from jax.experimental.pallas import tpu as pltpu


# ----------------------------------------------------------------------------
# Small-scale dimensions consistent with the module's structure:
#   PyTorch: feature map (1280, 7, 7) -> flat 62720 -> fc1 1000 -> fc2 500
#            -> heads [w0, w1, ...]
#   Here   : feature map (32, 8, 8)   -> flat 2048  -> fc1 256  -> fc2 128
#            -> heads [16, 8, 24]
# ----------------------------------------------------------------------------
C, HF, WF = 32, 8, 8
F_IN = C * HF * WF          # 2048  (analogue of 1280*7*7)
D1 = 256                    # analogue of 1000 (pad -> 1024 at real scale)
D2 = 128                    # analogue of 500  (pad -> 512 at real scale)
HEAD_WIDTHS = [16, 8, 24]   # "outputs": number of subclasses per class
TOTAL_OUT = sum(HEAD_WIDTHS)
OUT_PAD = 128               # lane-pad concatenated head dim (48 -> 128)

TK = F_IN                   # collapse the K grid at this scale (1 step);
                            # at real scale use a 128-multiple divisor of
                            # 62720 (1792 / 4480 / 6272) per chip generation.
TD1 = 128                   # fc1 output-column tile (leading 'parallel' axis)


def _fc1_kernel(x_ref, w1_ref, b1_ref, h1_ref, acc_ref):
    """h1[:, d-tile] = relu(x @ W1[:, d-tile] + b1[d-tile]), K-tiled accum."""
    k = pl.program_id(1)

    @pl.when(k == 0)
    def _():
        acc_ref[...] = jnp.zeros_like(acc_ref)

    # bf16 MXU inputs straight from VMEM (x pre-cast in the wrapper), f32 acc.
    acc_ref[...] += jnp.dot(x_ref[...], w1_ref[...],
                            preferred_element_type=jnp.float32)

    @pl.when(k == pl.num_programs(1) - 1)
    def _():
        h1 = jnp.maximum(acc_ref[...] + b1_ref[...], 0.0)
        h1_ref[...] = h1.astype(h1_ref.dtype)


def _head_kernel(h1_ref, w2_ref, b2_ref, w3_ref, b3_ref, o_ref):
    """Tiny unfused epilogue: fc2 -> ReLU -> concatenated heads (+bias)."""
    h2 = jnp.dot(h1_ref[...], w2_ref[...], preferred_element_type=jnp.float32)
    h2 = jnp.maximum(h2 + b2_ref[...], 0.0)                     # (B, D2)
    out = jnp.dot(h2.astype(jnp.bfloat16), w3_ref[...],
                  preferred_element_type=jnp.float32)
    o_ref[...] = out + b3_ref[...]                              # (B, OUT_PAD)


def hierarchical_model_forward(feat, params):
    """feat: (C, HF, WF) single sample or (B, C, HF, WF) batch of extracted
    feature maps.  Returns a tuple of per-head logits (1-D for a single
    sample, 2-D (B, width) for a batch)."""
    w1, b1, w2, b2, w3, b3 = params

    squeeze = feat.ndim == 3
    if squeeze:
        feat = feat[None]
    B = feat.shape[0]

    # x.view(1280*7*7) analogue, per sample; pre-cast to bf16 in the wrapper
    # (halves x HBM traffic, no per-step f32->bf16 vreg pass in the kernel),
    # and pad rows to a multiple of 8 sublanes (sliced off after).
    x = feat.reshape(B, F_IN).astype(jnp.bfloat16)
    Bp = max(8, ((B + 7) // 8) * 8)
    if Bp != B:
        x = jnp.zeros((Bp, F_IN), jnp.bfloat16).at[:B].set(x)

    n_d1 = D1 // TD1
    n_k = F_IN // TK          # TK divides F_IN exactly (no dropped remainder)

    # Advisory cost hint: this kernel is pure weight streaming (W1 dominates).
    fc1_cost = pl.CostEstimate(
        flops=2 * Bp * F_IN * D1,
        transcendentals=0,
        bytes_accessed=F_IN * D1 * 2 + Bp * F_IN * 2 + Bp * D1 * 2,
    )

    # Kernel 1: fc1 + ReLU, parallel over D1 tiles (both TCs on v7x),
    # arbitrary over the K reduction.  Default double-buffering on x/W1.
    h1 = pl.pallas_call(
        _fc1_kernel,
        out_shape=jax.ShapeDtypeStruct((Bp, D1), jnp.bfloat16),
        grid_spec=pltpu.PrefetchScalarGridSpec(
            num_scalar_prefetch=0,
            grid=(n_d1, n_k),
            in_specs=[
                pl.BlockSpec((Bp, TK), lambda d, k: (0, k)),    # x K-tile
                pl.BlockSpec((TK, TD1), lambda d, k: (k, d)),   # W1 tile
                pl.BlockSpec((1, TD1), lambda d, k: (0, d)),    # b1 tile
            ],
            out_specs=pl.BlockSpec((Bp, TD1), lambda d, k: (0, d)),
            scratch_shapes=[pltpu.VMEM((Bp, TD1), jnp.float32)],  # fc1 accum
        ),
        compiler_params=pltpu.CompilerParams(
            # At real scale also set vmem_limit_bytes (see header comment).
            dimension_semantics=("parallel", "arbitrary")),
        cost_estimate=fc1_cost,
    )(x, w1, b1)

    # Kernel 2: fc2 -> ReLU -> concatenated heads.  Whole arrays fit VMEM;
    # single invocation, lane-dense (128-wide) output for unmasked stores.
    out = pl.pallas_call(
        _head_kernel,
        out_shape=jax.ShapeDtypeStruct((Bp, OUT_PAD), jnp.float32),
    )(h1, w2, b2, w3, b3)

    logits = out[:B, :TOTAL_OUT]
    heads, off = [], 0
    for w in HEAD_WIDTHS:
        h = logits[:, off:off + w]
        heads.append(h[0] if squeeze else h)
        off += w
    return tuple(heads)


def init_params(key):
    """Deterministic synthetic parameters.  Weights are bf16 (halves the
    dominant HBM weight traffic); biases stay f32; the concatenated head
    weight/bias are zero-padded to OUT_PAD columns for unmasked stores."""
    k1, k2, k3, k4, k5, k6 = jax.random.split(key, 6)
    w1 = (jax.random.normal(k1, (F_IN, D1), jnp.float32) * 0.02
          ).astype(jnp.bfloat16)
    b1 = jax.random.normal(k2, (1, D1), jnp.float32) * 0.02
    w2 = (jax.random.normal(k3, (D1, D2), jnp.float32) * 0.02
          ).astype(jnp.bfloat16)
    b2 = jax.random.normal(k4, (1, D2), jnp.float32) * 0.02
    # Per-head Linear(D2, width), concatenated along the output axis.
    w3 = (jax.random.normal(k5, (D2, TOTAL_OUT), jnp.float32) * 0.02
          ).astype(jnp.bfloat16)
    b3 = jax.random.normal(k6, (1, TOTAL_OUT), jnp.float32) * 0.02
    w3 = jnp.zeros((D2, OUT_PAD), jnp.bfloat16).at[:, :TOTAL_OUT].set(w3)
    b3 = jnp.zeros((1, OUT_PAD), jnp.float32).at[:, :TOTAL_OUT].set(b3)
    return (w1, b1, w2, b2, w3, b3)


def reference_forward(feat, params):
    """Pure-JAX reference mirroring the kernel's bf16 dot inputs / f32 accum."""
    w1, b1, w2, b2, w3, b3 = params
    squeeze = feat.ndim == 3
    if squeeze:
        feat = feat[None]
    B = feat.shape[0]
    x = feat.reshape(B, F_IN).astype(jnp.bfloat16)
    h1 = jnp.maximum(
        jnp.dot(x, w1, preferred_element_type=jnp.float32) + b1, 0.0)
    h2 = jnp.maximum(
        jnp.dot(h1.astype(jnp.bfloat16), w2,
                preferred_element_type=jnp.float32) + b2, 0.0)
    logits = (jnp.dot(h2.astype(jnp.bfloat16), w3,
                      preferred_element_type=jnp.float32) + b3)[:, :TOTAL_OUT]
    heads, off = [], 0
    for w in HEAD_WIDTHS:
        h = logits[:, off:off + w]
        heads.append(h[0] if squeeze else h)
        off += w
    return tuple(heads)


if __name__ == "__main__":
    key = jax.random.PRNGKey(0)
    k_feat, k_par, k_batch = jax.random.split(key, 3)
    params = init_params(k_par)

    # Single sample, matching the module's forward (x.view(1280*7*7)).
    feat = jax.random.normal(k_feat, (C, HF, WF), jnp.float32)
    outs = jax.block_until_ready(hierarchical_model_forward(feat, params))
    refs = reference_forward(feat, params)
    for o, r, w in zip(outs, refs, HEAD_WIDTHS):
        assert o.shape == (w,), (o.shape, w)
        assert jnp.allclose(o, r, atol=2e-3, rtol=2e-3), "mismatch vs reference"

    # Batched path (B = 8 = full sublane): amortizes the dominant W1 stream.
    feat_b = jax.random.normal(k_batch, (8, C, HF, WF), jnp.float32)
    outs_b = jax.block_until_ready(hierarchical_model_forward(feat_b, params))
    refs_b = reference_forward(feat_b, params)
    for o, r, w in zip(outs_b, refs_b, HEAD_WIDTHS):
        assert o.shape == (8, w), (o.shape, w)
        assert jnp.allclose(o, r, atol=2e-3, rtol=2e-3), "batched mismatch"

    print("KERNEL_OK")
</pallas_src>

<mosaic_0001>
module attributes {stable_mosaic.version = 11 : i64} {
  func.func @_fc1_kernel(%arg0: i32, %arg1: i32, %arg2: memref<8x2048xbf16, #tpu.memory_space<vmem>>, %arg3: memref<2048x128xbf16, #tpu.memory_space<vmem>>, %arg4: memref<1x128xf32, #tpu.memory_space<vmem>>, %arg5: memref<8x128xbf16, #tpu.memory_space<vmem>>, %arg6: memref<8x128xf32, #tpu.memory_space<vmem>>) attributes {dimension_semantics = [#tpu.dimension_semantics<parallel>, #tpu.dimension_semantics<arbitrary>], iteration_bounds = array<i64: 2, 1>, scalar_prefetch = 0 : i64, scratch_operands = 1 : i64, tpu.core_type = #tpu.core_type<tc>, window_params = [{transform_indices = @transform_0, window_bounds = array<i64: 8, 2048>}, {transform_indices = @transform_1, window_bounds = array<i64: 2048, 128>}, {transform_indices = @transform_2, window_bounds = array<i64: 1, 128>}, {transform_indices = @transform_3, window_bounds = array<i64: 8, 128>}]} {
    %c0_i32 = arith.constant 0 : i32
    %0 = arith.cmpi eq, %arg1, %c0_i32 : i32
    %1 = arith.extui %0 : i1 to i32
    %c0_i32_0 = arith.constant 0 : i32
    %2 = arith.cmpi ne, %1, %c0_i32_0 : i32
    scf.if %2 {
      %cst_10 = arith.constant 0.000000e+00 : f32
      %12 = vector.broadcast %cst_10 : f32 to vector<8x128xf32>
      %c0_11 = arith.constant 0 : index
      %c0_12 = arith.constant 0 : index
      %13 = vector.load %arg6[%c0_11, %c0_12] : memref<8x128xf32, #tpu.memory_space<vmem>>, vector<8x128xf32>
      tpu.vector_store %arg6[%c0_11, %c0_12], %12 {strides = array<i32>} : memref<8x128xf32, #tpu.memory_space<vmem>>, vector<8x128xf32>,
    } else {
    }
    %c0 = arith.constant 0 : index
    %c0_1 = arith.constant 0 : index
    %3 = vector.load %arg6[%c0, %c0_1] : memref<8x128xf32, #tpu.memory_space<vmem>>, vector<8x128xf32>
    %c0_2 = arith.constant 0 : index
    %c0_3 = arith.constant 0 : index
    %4 = vector.load %arg2[%c0_2, %c0_3] : memref<8x2048xbf16, #tpu.memory_space<vmem>>, vector<8x2048xbf16>
    %c0_4 = arith.constant 0 : index
    %c0_5 = arith.constant 0 : index
    %5 = vector.load %arg3[%c0_4, %c0_5] : memref<2048x128xbf16, #tpu.memory_space<vmem>>, vector<2048x128xbf16>
    %cst = arith.constant dense<0.000000e+00> : vector<8x128xf32>
    %6 = tpu.matmul %4, %5, %cst {dimension_numbers = #tpu.dot_dimension_numbers<[1], [0], [0], [1], [0, 0, 1, 1], [], []>} : vector<8x2048xbf16>, vector<2048x128xbf16>, vector<8x128xf32> -> vector<8x128xf32>
    %7 = arith.addf %3, %6 : vector<8x128xf32>
    %c0_6 = arith.constant 0 : index
    %c0_7 = arith.constant 0 : index
    %8 = vector.load %arg6[%c0_6, %c0_7] : memref<8x128xf32, #tpu.memory_space<vmem>>, vector<8x128xf32>
    tpu.vector_store %arg6[%c0_6, %c0_7], %7 {strides = array<i32>} : memref<8x128xf32, #tpu.memory_space<vmem>>, vector<8x128xf32>,
    %c0_i32_8 = arith.constant 0 : i32
    %9 = arith.cmpi eq, %arg1, %c0_i32_8 : i32
    %10 = arith.extui %9 : i1 to i32
    %c0_i32_9 = arith.constant 0 : i32
    %11 = arith.cmpi ne, %10, %c0_i32_9 : i32
    scf.if %11 {
      %c0_10 = arith.constant 0 : index
      %c0_11 = arith.constant 0 : index
      %12 = vector.load %arg6[%c0_10, %c0_11] : memref<8x128xf32, #tpu.memory_space<vmem>>, vector<8x128xf32>
      %c0_12 = arith.constant 0 : index
      %c0_13 = arith.constant 0 : index
      %13 = vector.load %arg4[%c0_12, %c0_13] : memref<1x128xf32, #tpu.memory_space<vmem>>, vector<1x128xf32>
      %14 = vector.broadcast %13 : vector<1x128xf32> to vector<8x128xf32>
      %15 = arith.addf %12, %14 : vector<8x128xf32>
      %cst_14 = arith.constant 0.000000e+00 : f32
      %16 = vector.broadcast %cst_14 : f32 to vector<8x128xf32>
      %17 = arith.maximumf %15, %16 : vector<8x128xf32>
      %18 = arith.truncf %17 : vector<8x128xf32> to vector<8x128xbf16>
      %c0_15 = arith.constant 0 : index
      %c0_16 = arith.constant 0 : index
      %19 = vector.load %arg5[%c0_15, %c0_16] : memref<8x128xbf16, #tpu.memory_space<vmem>>, vector<8x128xbf16>
      tpu.vector_store %arg5[%c0_15, %c0_16], %18 {strides = array<i32>} : memref<8x128xbf16, #tpu.memory_space<vmem>>, vector<8x128xbf16>,
    } else {
    }
    return
  }
  func.func @transform_0(%arg0: i32, %arg1: i32) -> (i32, i32) {
    %c0_i32 = arith.constant 0 : i32
    %c0_i32_0 = arith.constant 0 : i32
    return %c0_i32, %arg1 : i32, i32
  }
  func.func @transform_1(%arg0: i32, %arg1: i32) -> (i32, i32) {
    %c0_i32 = arith.constant 0 : i32
    return %arg1, %arg0 : i32, i32
  }
  func.func @transform_2(%arg0: i32, %arg1: i32) -> (i32, i32) {
    %c0_i32 = arith.constant 0 : i32
    %c0_i32_0 = arith.constant 0 : i32
    return %c0_i32, %arg0 : i32, i32
  }
  func.func @transform_3(%arg0: i32, %arg1: i32) -> (i32, i32) {
    %c0_i32 = arith.constant 0 : i32
    %c0_i32_0 = arith.constant 0 : i32
    return %c0_i32, %arg0 : i32, i32
  }
}

</mosaic_0001>

<llo_original>
// kernel: tpu_custom_call.1
$region0: #{tpu_custom_call.1}
  #allocation0 [shape = 'u32[]', space=smem, size = 0x4, offset = 0x4, fixed_abs, tag = 'smem constant byte address 0x4 - core index']
  #allocation1 [shape = 'u32[144,128]{1,0:T(1,128)}', space=vmem, size = 0x12000, scoped, tag = 'internal scratch']
  #allocation2 [shape = 'f32[8,128]{1,0:T(8,128)}', space=vmem, size = 0x1000, scoped, tag = 'scratch operand']
  %s0 = inlined_call_operand.hbm [shape: bf16[8,2048], index: 0, kind: input, shape index: {}]
  %s1 = inlined_call_operand.hbm [shape: bf16[2048,256], index: 1, kind: input, shape index: {}]
  %s2 = inlined_call_operand.vmem [shape: f32[1,256], index: 2, kind: input, shape index: {}]
  %s3 = inlined_call_operand.hbm [shape: bf16[8,256], index: 3, kind: output, shape index: {}]
  %s4 = sld [smem:[#allocation0]]
  $region61: #{tpu_custom_call.1} parent=0
    _
  %s6 = ssub.s32 1, %s4
  %s7 = scalar_select 0, %s6, %s4
  $region1: #{tpu_custom_call.1} parent=0
    #allocation3 [shape = 'u8[32768]{0}', space=vmem, size = 0x8000, scoped, tag = 'input window, operand 0, single buffered']
    #allocation4 [shape = 's32[2]{0}', space=sflag, size = 0x8, scoped, tag = 'scoped memory for tpu_custom_call.1']
    #allocation5 [shape = 's32[2]{0}', space=sflag, size = 0x8, scoped, tag = 'scoped memory for tpu_custom_call.1']
    #allocation6 [shape = 'u8[1048576]{0}', space=vmem, size = 0x100000, scoped, tag = 'input window, operand 1']
    #allocation7 [shape = 's32[2]{0}', space=sflag, size = 0x8, scoped, tag = 'scoped memory for tpu_custom_call.1']
    #allocation8 [shape = 'u8[4096]{0}', space=vmem, size = 0x1000, scoped, tag = 'output window, operand 0']
    %8 = vsyncpa [#allocation4], 0
    %9 = vsyncpa [#allocation7], 0
    %s10 = scalar_lea.sflag [#allocation7], 1
    %11 = vsyncpa %s10, 0
    %12 = vsyncpa [#allocation5], 0
    %s13 = scalar_lea.sflag [#allocation5], 1
    %14 = vsyncpa %s13, 0
    loop: start=0, step=1, limit=4
    $region2: #{tpu_custom_call.1} parent=1 // loop_pre_header
      _
    $region3: #{tpu_custom_call.1} parent=1 // loop_header
      %s16 = sphi 0, %s20
      %p17 = scmp.ge.s32.totalorder %s16, 4
      %s23 = sphi 0, %s35
      %s24 = sphi 0, %s31
      %s25 = sphi 0, %s23
      %s26 = sphi 0, %s24
      %s27 = sphi 0, %s25
      %s28 = sphi 0, %s26
      %s38 = sphi 0, %s40
      %s41 = sphi 0, %s38
      %s42 = sphi 0, %s41
      %s58 = sphi 0, %s42
      %s66 = sphi 0, %s68
      %s69 = sphi 0, %s66
      %s70 = sphi 0, %s69
      %s86 = sphi 0, %s70
      %s92 = sphi 0, %s94
      %s95 = sphi 0, %s92
      %s96 = sphi 0, %s95
      %s112 = sphi 0, %s96
      %s118 = sphi 0, %s120
      %s121 = sphi 0, %s118
      %s122 = sphi 0, %s121
      %s138 = sphi 0, %s122
    $region4: #{tpu_custom_call.1} parent=1 // loop_header_branch
      %19 = sbr.rel (%p17) target = $region8
    $region5: #{tpu_custom_call.1} parent=1 // loop_body
      %s21 = ssub.s32 %s16, 1
      %s22 = ssub.s32 %s16, 2
      %s29 = sadd.s32 1, %s24
      %p30 = scmp.ge.s32.totalorder %s29, 1
      %s31 = scalar_select %p30, 0, %s29
      %s32 = sadd.s32 1, %s23
      %s33 = scalar_select %p30, %s32, %s23
      %p34 = scmp.ge.s32.totalorder %s33, 2
      %s35 = scalar_select %p34, 0, %s33
      %s36 = ssub.s32 %s24, %s31
      %p37 = scmp.eq.s32.totalorder %s36, 0
      %s39 = sadd.s32 %s38, 1
      %s40 = scalar_select %p37, %s38, %s39
      %p43 = pneg %p37
      %p44 = scmp.eq.s32.totalorder %s16, 1
      %p45 = por %p43, %p44
      %p46 = scmp.ne.s32.totalorder %s38, %s41
      %p47 = scmp.eq.s32.totalorder %s16, 0
      %p48 = por %p46, %p47
      %p49 = scmp.ne.s32.totalorder %s38, %s41
      %p50 = scmp.eq.s32.totalorder %s21, 1
      %p51 = por %p49, %p50
      %p52 = scmp.ne.s32.totalorder %s41, %s42
      %p53 = scmp.eq.s32.totalorder %s21, 0
      %p54 = por %p52, %p53
      %p55 = scmp.ne.s32.totalorder %s41, %s42
      %p56 = scmp.eq.s32.totalorder %s22, 1
      %p57 = por %p55, %p56
      %p59 = scmp.ne.s32.totalorder %s42, %s58
      %p60 = scmp.eq.s32.totalorder %s22, 0
      %p61 = por %p59, %p60
      %s62 = ssub.s32 %s24, %s31
      %s63 = ssub.s32 %s23, %s35
      %s64 = sor.u32 %s62, %s63
      %p65 = scmp.eq.s32.totalorder %s64, 0
      %s67 = sadd.s32 %s66, 1
      %s68 = scalar_select %p65, %s66, %s67
      %p71 = pneg %p65
      %p72 = scmp.eq.s32.totalorder %s16, 1
      %p73 = por %p71, %p72
      %p74 = scmp.ne.s32.totalorder %s66, %s69
      %p75 = scmp.eq.s32.totalorder %s16, 0
      %p76 = por %p74, %p75
      %p77 = scmp.ne.s32.totalorder %s66, %s69
      %p78 = scmp.eq.s32.totalorder %s21, 1
      %p79 = por %p77, %p78
      %p80 = scmp.ne.s32.totalorder %s69, %s70
      %p81 = scmp.eq.s32.totalorder %s21, 0
      %p82 = por %p80, %p81
      %p83 = scmp.ne.s32.totalorder %s69, %s70
      %p84 = scmp.eq.s32.totalorder %s22, 1
      %p85 = por %p83, %p84
      %p87 = scmp.ne.s32.totalorder %s70, %s86
      %p88 = scmp.eq.s32.totalorder %s22, 0
      %p89 = por %p87, %p88
      %s90 = ssub.s32 %s23, %s35
      %p91 = scmp.eq.s32.totalorder %s90, 0
      %s93 = sadd.s32 %s92, 1
      %s94 = scalar_select %p91, %s92, %s93
      %p97 = pneg %p91
      %p98 = scmp.eq.s32.totalorder %s16, 1
      %p99 = por %p97, %p98
      %p100 = scmp.ne.s32.totalorder %s92, %s95
      %p101 = scmp.eq.s32.totalorder %s16, 0
      %p102 = por %p100, %p101
      %p103 = scmp.ne.s32.totalorder %s92, %s95
      %p104 = scmp.eq.s32.totalorder %s21, 1
      %p105 = por %p103, %p104
      %p106 = scmp.ne.s32.totalorder %s95, %s96
      %p107 = scmp.eq.s32.totalorder %s21, 0
      %p108 = por %p106, %p107
      %p109 = scmp.ne.s32.totalorder %s95, %s96
      %p110 = scmp.eq.s32.totalorder %s22, 1
      %p111 = por %p109, %p110
      %p113 = scmp.ne.s32.totalorder %s96, %s112
      %p114 = scmp.eq.s32.totalorder %s22, 0
      %p115 = por %p113, %p114
      %s116 = ssub.s32 %s23, %s35
      %p117 = scmp.eq.s32.totalorder %s116, 0
      %s119 = sadd.s32 %s118, 1
      %s120 = scalar_select %p117, %s118, %s119
      %p123 = pneg %p117
      %p124 = scmp.eq.s32.totalorder %s16, 1
      %p125 = por %p123, %p124
      %p126 = scmp.ne.s32.totalorder %s118, %s121
      %p127 = scmp.eq.s32.totalorder %s16, 0
      %p128 = por %p126, %p127
      %p129 = scmp.ne.s32.totalorder %s118, %s121
      %p130 = scmp.eq.s32.totalorder %s21, 1
      %p131 = por %p129, %p130
      %p132 = scmp.ne.s32.totalorder %s121, %s122
      %p133 = scmp.eq.s32.totalorder %s21, 0
      %p134 = por %p132, %p133
      %p135 = scmp.ne.s32.totalorder %s121, %s122
      %p136 = scmp.eq.s32.totalorder %s22, 1
      %p137 = por %p135, %p136
      %p139 = scmp.ne.s32.totalorder %s122, %s138
      %p140 = scmp.eq.s32.totalorder %s22, 0
      %p141 = por %p139, %p140
      %p142 = scmp.le.s32.totalorder 1, %s16
      %p143 = scmp.lt.s32.totalorder %s16, 3
      %p144 = pnand %p142, %p143
      %p145 = pneg %p144
      // Predicated region
      $region9: #{tpu_custom_call.1} parent=5 // pred_check
        _
      $region10: #{tpu_custom_call.1} parent=5 // pred_check_branch
        %147 = sbr.rel (%p144) target = $region12
      $region11: #{tpu_custom_call.1} parent=5 // pred_region
        %s148 = ssub.s32 %s16, 1
        // Predicated region
        $region13: #{tpu_custom_call.1} parent=11 // pred_check
          %p149 = pneg %p54
        $region14: #{tpu_custom_call.1} parent=11 // pred_check_branch
          %151 = sbr.rel (%p149) target = $region16
        $region15: #{tpu_custom_call.1} parent=11 // pred_region
          %s152 = smul.u32 16, %s26
          %s154 = ssub.s32 1024, 1024
          %155 = vsyncadd [#allocation4], %s154
          %s156 = smul.addr %s152, 64
          %s157 = scalar_lea.hbm %s0, %s156
          %s159 = sshll.u32 [#allocation3], 4
          %s160 = int_to_ptr.vmem [resolvable:$true] %s159
          %162 = dma.hbm_to_vmem [thread:$0]  %s157, 1024, %s160, [#allocation4]
        $region16: #{tpu_custom_call.1} parent=11 // pred_fallthru
          _
      $region12: #{tpu_custom_call.1} parent=5 // pred_fallthru
        _
      %p163 = scmp.lt.s32.totalorder %s16, 2
      // Predicated region
      $region17: #{tpu_custom_call.1} parent=5 // pred_check
        %p164 = pneg %p163
      $region18: #{tpu_custom_call.1} parent=5 // pred_check_branch
        %166 = sbr.rel (%p164) target = $region20
      $region19: #{tpu_custom_call.1} parent=5 // pred_region
        // Predicated region
        $region21: #{tpu_custom_call.1} parent=19 // pred_check
          %p167 = pneg %p76
        $region22: #{tpu_custom_call.1} parent=19 // pred_check_branch
          %169 = sbr.rel (%p167) target = $region24
        $region23: #{tpu_custom_call.1} parent=19 // pred_region
          %s170 = sand.u32 %s66, 1
          %s171 = scalar_lea.sflag [#allocation7], %s170
          %s172 = sand.u32 %s66, 1
          %s173 = smul.addr %s172, 1024
          %s174 = scalar_lea.vmem [#allocation6], %s173
          %s175 = smul.u32 256, %s24
          %s177 = ssub.s32 16384, 16384
          %178 = vsyncadd %s171, %s177
          %s179 = smul.addr %s175, 2
          %s180 = sadd.s32 %s23, %s179
          %s181 = smul.addr %s180, 64
          %s182 = scalar_lea.hbm %s1, %s181
          %s183 = sshll.u32 %s174, 4
          %s184 = int_to_ptr.vmem [resolvable:$true] %s183
          %189 = dma.hbm_to_vmem [thread:$0]  %s182, 16384, %s184, %s171, 128, 64, 4
        $region24: #{tpu_custom_call.1} parent=19 // pred_fallthru
          _
        // Predicated region
        $region25: #{tpu_custom_call.1} parent=19 // pred_check
          %p190 = pneg %p102
        $region26: #{tpu_custom_call.1} parent=19 // pred_check_branch
          %192 = sbr.rel (%p190) target = $region28
        $region27: #{tpu_custom_call.1} parent=19 // pred_region
          %p193 = scmp.lt.s32.totalorder %s23, 1
          %s194 = scalar_select %p193, %s23, 1
          %s195 = scalar_lea.vmem %s2, %s194
        $region28: #{tpu_custom_call.1} parent=19 // pred_fallthru
          _
      $region20: #{tpu_custom_call.1} parent=5 // pred_fallthru
        _
      %p196 = scmp.le.s32.totalorder 1, %s16
      %p197 = scmp.lt.s32.totalorder %s16, 3
      %p198 = pnand %p196, %p197
      %p199 = pneg %p198
      // Predicated region
      $region29: #{tpu_custom_call.1} parent=5 // pred_check
        _
      $region30: #{tpu_custom_call.1} parent=5 // pred_check_branch
        %201 = sbr.rel (%p198) target = $region32
      $region31: #{tpu_custom_call.1} parent=5 // pred_region
        %s202 = ssub.s32 %s16, 1
        // Predicated region
        $region33: #{tpu_custom_call.1} parent=31 // pred_check
          %p203 = pneg %p54
        $region34: #{tpu_custom_call.1} parent=31 // pred_check_branch
          %205 = sbr.rel (%p203) target = $region36
        $region35: #{tpu_custom_call.1} parent=31 // pred_region
          %206 = dma.done [#allocation4], 1024
        $region36: #{tpu_custom_call.1} parent=31 // pred_fallthru
          _
        %s207 = sand.u32 %s69, 1
        %s208 = scalar_lea.sflag [#allocation7], %s207
        %s209 = sand.u32 %s69, 1
        %s210 = smul.addr %s209, 1024
        %s211 = scalar_lea.vmem [#allocation6], %s210
        // Predicated region
        $region37: #{tpu_custom_call.1} parent=31 // pred_check
          %p212 = pneg %p82
        $region38: #{tpu_custom_call.1} parent=31 // pred_check_branch
          %214 = sbr.rel (%p212) target = $region40
        $region39: #{tpu_custom_call.1} parent=31 // pred_region
          %215 = dma.done %s208, 16384
        $region40: #{tpu_custom_call.1} parent=31 // pred_fallthru
          _
        %p216 = pneg %p54
        %p217 = pneg %p51
        %s218 = sand.u32 %s69, 1
        %s219 = scalar_lea.sflag [#allocation7], %s218
        %s220 = sand.u32 %s69, 1
        %s221 = smul.addr %s220, 1024
        %s222 = scalar_lea.vmem [#allocation6], %s221
        %p223 = pneg %p82
        %p224 = pneg %p79
        %p225 = scmp.lt.s32.totalorder %s25, 1
        %s226 = scalar_select %p225, %s25, 1
        %s227 = scalar_lea.vmem %s2, %s226
        %p228 = pneg %p108
        %p229 = pneg %p105
        %p230 = pneg %p134
        %p231 = pneg %p131
        %s232 = sand.u32 %s121, 1
        %s233 = scalar_lea.sflag [#allocation5], %s232
        %s234 = sand.u32 %s121, 1
        %s235 = smul.addr %s234, 4
        %s236 = scalar_lea.vmem [#allocation8], %s235
        %s237 = smul.u32 16, %s26
        %s238 = smul.u32 256, %s26
        %p239 = scmp.lt.s32.totalorder %s25, 1
        %s240 = scalar_select %p239, %s25, 1
        %s241 = scalar_lea.vmem %s2, %s240
        %p243 = scmp.eq.s32.totalorder %s26, 0
        // Predicated region
        $region41: #{tpu_custom_call.1} parent=31 // pred_check
          %p244 = pneg %p243
        $region42: #{tpu_custom_call.1} parent=31 // pred_check_branch
          %246 = sbr.rel (%p244) target = $region44
        $region43: #{tpu_custom_call.1} parent=31 // pred_region
          %247 = vst [vmem:[#allocation2] sm:$0xff] 0.0
        $region44: #{tpu_custom_call.1} parent=31 // pred_fallthru
          _
        %v248 = vld [vmem:[#allocation2] sm:$0xff]
        %v249 = vld [vmem:[#allocation3] sm:$0xff]
        %v250 = vld [vmem:[#allocation3 + $0x8] sm:$0xff]
        %v251 = vld [vmem:[#allocation3 + $0x10] sm:$0xff]
        %v252 = vld [vmem:[#allocation3 + $0x18] sm:$0xff]
        %v253 = vld [vmem:[#allocation3 + $0x20] sm:$0xff]
        %v254 = vld [vmem:[#allocation3 + $0x28] sm:$0xff]
        %v255 = vld [vmem:[#allocation3 + $0x30] sm:$0xff]
        %v256 = vld [vmem:[#allocation3 + $0x38] sm:$0xff]
        %v257 = vld [vmem:[%s211] sm:$0xf]
        %v258 = vld [vmem:[%s211 + $0x4] sm:$0xf]
        %v259 = vld [vmem:[%s211 + $0x8] sm:$0xf]
        %v260 = vld [vmem:[%s211 + $0xc] sm:$0xf]
        %v261 = vld [vmem:[%s211 + $0x10] sm:$0xf]
        %v262 = vld [vmem:[%s211 + $0x14] sm:$0xf]
        %v263 = vld [vmem:[%s211 + $0x18] sm:$0xf]
        %v264 = vld [vmem:[%s211 + $0x1c] sm:$0xf]
        %v265 = vld [vmem:[%s211 + $0x20] sm:$0xf]
        %v266 = vld [vmem:[%s211 + $0x24] sm:$0xf]
        %v267 = vld [vmem:[%s211 + $0x28] sm:$0xf]
        %v268 = vld [vmem:[%s211 + $0x2c] sm:$0xf]
        %v269 = vld [vmem:[%s211 + $0x30] sm:$0xf]
        %v270 = vld [vmem:[%s211 + $0x34] sm:$0xf]
        %v271 = vld [vmem:[%s211 + $0x38] sm:$0xf]
        %v272 = vld [vmem:[%s211 + $0x3c] sm:$0xf]
        %v273 = vld [vmem:[%s211 + $0x40] sm:$0xf]
        %v274 = vld [vmem:[%s211 + $0x44] sm:$0xf]
        %v275 = vld [vmem:[%s211 + $0x48] sm:$0xf]
        %v276 = vld [vmem:[%s211 + $0x4c] sm:$0xf]
        %v277 = vld [vmem:[%s211 + $0x50] sm:$0xf]
        %v278 = vld [vmem:[%s211 + $0x54] sm:$0xf]
        %v279 = vld [vmem:[%s211 + $0x58] sm:$0xf]
        %v280 = vld [vmem:[%s211 + $0x5c] sm:$0xf]
        %v281 = vld [vmem:[%s211 + $0x60] sm:$0xf]
        %v282 = vld [vmem:[%s211 + $0x64] sm:$0xf]
        %v283 = vld [vmem:[%s211 + $0x68] sm:$0xf]
        %v284 = vld [vmem:[%s211 + $0x6c] sm:$0xf]
        %v285 = vld [vmem:[%s211 + $0x70] sm:$0xf]
        %v286 = vld [vmem:[%s211 + $0x74] sm:$0xf]
        %v287 = vld [vmem:[%s211 + $0x78] sm:$0xf]
        %v288 = vld [vmem:[%s211 + $0x7c] sm:$0xf]
        %v289 = vld [vmem:[%s211 + $0x80] sm:$0xf]
        %v290 = vld [vmem:[%s211 + $0x84] sm:$0xf]
        %v291 = vld [vmem:[%s211 + $0x88] sm:$0xf]
        %v292 = vld [vmem:[%s211 + $0x8c] sm:$0xf]
        %v293 = vld [vmem:[%s211 + $0x90] sm:$0xf]
        %v294 = vld [vmem:[%s211 + $0x94] sm:$0xf]
        %v295 = vld [vmem:[%s211 + $0x98] sm:$0xf]
        %v296 = vld [vmem:[%s211 + $0x9c] sm:$0xf]
        %v297 = vld [vmem:[%s211 + $0xa0] sm:$0xf]
        %v298 = vld [vmem:[%s211 + $0xa4] sm:$0xf]
        %v299 = vld [vmem:[%s211 + $0xa8] sm:$0xf]
        %v300 = vld [vmem:[%s211 + $0xac] sm:$0xf]
        %v301 = vld [vmem:[%s211 + $0xb0] sm:$0xf]
        %v302 = vld [vmem:[%s211 + $0xb4] sm:$0xf]
        %v303 = vld [vmem:[%s211 + $0xb8] sm:$0xf]
        %v304 = vld [vmem:[%s211 + $0xbc] sm:$0xf]
        %v305 = vld [vmem:[%s211 + $0xc0] sm:$0xf]
        %v306 = vld [vmem:[%s211 + $0xc4] sm:$0xf]
        %v307 = vld [vmem:[%s211 + $0xc8] sm:$0xf]
        %v308 = vld [vmem:[%s211 + $0xcc] sm:$0xf]
        %v309 = vld [vmem:[%s211 + $0xd0] sm:$0xf]
        %v310 = vld [vmem:[%s211 + $0xd4] sm:$0xf]
        %v311 = vld [vmem:[%s211 + $0xd8] sm:$0xf]
        %v312 = vld [vmem:[%s211 + $0xdc] sm:$0xf]
        %v313 = vld [vmem:[%s211 + $0xe0] sm:$0xf]
        %v314 = vld [vmem:[%s211 + $0xe4] sm:$0xf]
        %v315 = vld [vmem:[%s211 + $0xe8] sm:$0xf]
        %v316 = vld [vmem:[%s211 + $0xec] sm:$0xf]
        %v317 = vld [vmem:[%s211 + $0xf0] sm:$0xf]
        %v318 = vld [vmem:[%s211 + $0xf4] sm:$0xf]
        %v319 = vld [vmem:[%s211 + $0xf8] sm:$0xf]
        %v320 = vld [vmem:[%s211 + $0xfc] sm:$0xf]
        %v321 = vld [vmem:[%s211 + $0x100] sm:$0xf]
        %v322 = vld [vmem:[%s211 + $0x104] sm:$0xf]
        %v323 = vld [vmem:[%s211 + $0x108] sm:$0xf]
        %v324 = vld [vmem:[%s211 + $0x10c] sm:$0xf]
        %v325 = vld [vmem:[%s211 + $0x110] sm:$0xf]
        %v326 = vld [vmem:[%s211 + $0x114] sm:$0xf]
        %v327 = vld [vmem:[%s211 + $0x118] sm:$0xf]
        %v328 = vld [vmem:[%s211 + $0x11c] sm:$0xf]
        %v329 = vld [vmem:[%s211 + $0x120] sm:$0xf]
        %v330 = vld [vmem:[%s211 + $0x124] sm:$0xf]
        %v331 = vld [vmem:[%s211 + $0x128] sm:$0xf]
        %v332 = vld [vmem:[%s211 + $0x12c] sm:$0xf]
        %v333 = vld [vmem:[%s211 + $0x130] sm:$0xf]
        %v334 = vld [vmem:[%s211 + $0x134] sm:$0xf]
        %v335 = vld [vmem:[%s211 + $0x138] sm:$0xf]
        %v336 = vld [vmem:[%s211 + $0x13c] sm:$0xf]
        %v337 = vld [vmem:[%s211 + $0x140] sm:$0xf]
        %v338 = vld [vmem:[%s211 + $0x144] sm:$0xf]
        %v339 = vld [vmem:[%s211 + $0x148] sm:$0xf]
        %v340 = vld [vmem:[%s211 + $0x14c] sm:$0xf]
        %v341 = vld [vmem:[%s211 + $0x150] sm:$0xf]
        %v342 = vld [vmem:[%s211 + $0x154] sm:$0xf]
        %v343 = vld [vmem:[%s211 + $0x158] sm:$0xf]
        %v344 = vld [vmem:[%s211 + $0x15c] sm:$0xf]
        %v345 = vld [vmem:[%s211 + $0x160] sm:$0xf]
        %v346 = vld [vmem:[%s211 + $0x164] sm:$0xf]
        %v347 = vld [vmem:[%s211 + $0x168] sm:$0xf]
        %v348 = vld [vmem:[%s211 + $0x16c] sm:$0xf]
        %v349 = vld [vmem:[%s211 + $0x170] sm:$0xf]
        %v350 = vld [vmem:[%s211 + $0x174] sm:$0xf]
        %v351 = vld [vmem:[%s211 + $0x178] sm:$0xf]
        %v352 = vld [vmem:[%s211 + $0x17c] sm:$0xf]
        %v353 = vld [vmem:[%s211 + $0x180] sm:$0xf]
        %v354 = vld [vmem:[%s211 + $0x184] sm:$0xf]
        %v355 = vld [vmem:[%s211 + $0x188] sm:$0xf]
        %v356 = vld [vmem:[%s211 + $0x18c] sm:$0xf]
        %v357 = vld [vmem:[%s211 + $0x190] sm:$0xf]
        %v358 = vld [vmem:[%s211 + $0x194] sm:$0xf]
        %v359 = vld [vmem:[%s211 + $0x198] sm:$0xf]
        %v360 = vld [vmem:[%s211 + $0x19c] sm:$0xf]
        %v361 = vld [vmem:[%s211 + $0x1a0] sm:$0xf]
        %v362 = vld [vmem:[%s211 + $0x1a4] sm:$0xf]
        %v363 = vld [vmem:[%s211 + $0x1a8] sm:$0xf]
        %v364 = vld [vmem:[%s211 + $0x1ac] sm:$0xf]
        %v365 = vld [vmem:[%s211 + $0x1b0] sm:$0xf]
        %v366 = vld [vmem:[%s211 + $0x1b4] sm:$0xf]
        %v367 = vld [vmem:[%s211 + $0x1b8] sm:$0xf]
        %v368 = vld [vmem:[%s211 + $0x1bc] sm:$0xf]
        %v369 = vld [vmem:[%s211 + $0x1c0] sm:$0xf]
        %v370 = vld [vmem:[%s211 + $0x1c4] sm:$0xf]
        %v371 = vld [vmem:[%s211 + $0x1c8] sm:$0xf]
        %v372 = vld [vmem:[%s211 + $0x1cc] sm:$0xf]
        %v373 = vld [vmem:[%s211 + $0x1d0] sm:$0xf]
        %v374 = vld [vmem:[%s211 + $0x1d4] sm:$0xf]
        %v375 = vld [vmem:[%s211 + $0x1d8] sm:$0xf]
        %v376 = vld [vmem:[%s211 + $0x1dc] sm:$0xf]
        %v377 = vld [vmem:[%s211 + $0x1e0] sm:$0xf]
        %v378 = vld [vmem:[%s211 + $0x1e4] sm:$0xf]
        %v379 = vld [vmem:[%s211 + $0x1e8] sm:$0xf]
        %v380 = vld [vmem:[%s211 + $0x1ec] sm:$0xf]
        %v381 = vld [vmem:[%s211 + $0x1f0] sm:$0xf]
        %v382 = vld [vmem:[%s211 + $0x1f4] sm:$0xf]
        %v383 = vld [vmem:[%s211 + $0x1f8] sm:$0xf]
        %v384 = vld [vmem:[%s211 + $0x1fc] sm:$0xf]
        %v385 = vld [vmem:[%s211 + $0x200] sm:$0xf]
        %v386 = vld [vmem:[%s211 + $0x204] sm:$0xf]
        %v387 = vld [vmem:[%s211 + $0x208] sm:$0xf]
        %v388 = vld [vmem:[%s211 + $0x20c] sm:$0xf]
        %v389 = vld [vmem:[%s211 + $0x210] sm:$0xf]
        %v390 = vld [vmem:[%s211 + $0x214] sm:$0xf]
        %v391 = vld [vmem:[%s211 + $0x218] sm:$0xf]
        %v392 = vld [vmem:[%s211 + $0x21c] sm:$0xf]
        %v393 = vld [vmem:[%s211 + $0x220] sm:$0xf]
        %v394 = vld [vmem:[%s211 + $0x224] sm:$0xf]
        %v395 = vld [vmem:[%s211 + $0x228] sm:$0xf]
        %v396 = vld [vmem:[%s211 + $0x22c] sm:$0xf]
        %v397 = vld [vmem:[%s211 + $0x230] sm:$0xf]
        %v398 = vld [vmem:[%s211 + $0x234] sm:$0xf]
        %v399 = vld [vmem:[%s211 + $0x238] sm:$0xf]
        %v400 = vld [vmem:[%s211 + $0x23c] sm:$0xf]
        %v401 = vld [vmem:[%s211 + $0x240] sm:$0xf]
        %v402 = vld [vmem:[%s211 + $0x244] sm:$0xf]
        %v403 = vld [vmem:[%s211 + $0x248] sm:$0xf]
        %v404 = vld [vmem:[%s211 + $0x24c] sm:$0xf]
        %v405 = vld [vmem:[%s211 + $0x250] sm:$0xf]
        %v406 = vld [vmem:[%s211 + $0x254] sm:$0xf]
        %v407 = vld [vmem:[%s211 + $0x258] sm:$0xf]
        %v408 = vld [vmem:[%s211 + $0x25c] sm:$0xf]
        %v409 = vld [vmem:[%s211 + $0x260] sm:$0xf]
        %v410 = vld [vmem:[%s211 + $0x264] sm:$0xf]
        %v411 = vld [vmem:[%s211 + $0x268] sm:$0xf]
        %v412 = vld [vmem:[%s211 + $0x26c] sm:$0xf]
        %v413 = vld [vmem:[%s211 + $0x270] sm:$0xf]
        %v414 = vld [vmem:[%s211 + $0x274] sm:$0xf]
        %v415 = vld [vmem:[%s211 + $0x278] sm:$0xf]
        %v416 = vld [vmem:[%s211 + $0x27c] sm:$0xf]
        %v417 = vld [vmem:[%s211 + $0x280] sm:$0xf]
        %v418 = vld [vmem:[%s211 + $0x284] sm:$0xf]
        %v419 = vld [vmem:[%s211 + $0x288] sm:$0xf]
        %v420 = vld [vmem:[%s211 + $0x28c] sm:$0xf]
        %v421 = vld [vmem:[%s211 + $0x290] sm:$0xf]
        %v422 = vld [vmem:[%s211 + $0x294] sm:$0xf]
        %v423 = vld [vmem:[%s211 + $0x298] sm:$0xf]
        %v424 = vld [vmem:[%s211 + $0x29c] sm:$0xf]
        %v425 = vld [vmem:[%s211 + $0x2a0] sm:$0xf]
        %v426 = vld [vmem:[%s211 + $0x2a4] sm:$0xf]
        %v427 = vld [vmem:[%s211 + $0x2a8] sm:$0xf]
        %v428 = vld [vmem:[%s211 + $0x2ac] sm:$0xf]
        %v429 = vld [vmem:[%s211 + $0x2b0] sm:$0xf]
        %v430 = vld [vmem:[%s211 + $0x2b4] sm:$0xf]
        %v431 = vld [vmem:[%s211 + $0x2b8] sm:$0xf]
        %v432 = vld [vmem:[%s211 + $0x2bc] sm:$0xf]
        %v433 = vld [vmem:[%s211 + $0x2c0] sm:$0xf]
        %v434 = vld [vmem:[%s211 + $0x2c4] sm:$0xf]
        %v435 = vld [vmem:[%s211 + $0x2c8] sm:$0xf]
        %v436 = vld [vmem:[%s211 + $0x2cc] sm:$0xf]
        %v437 = vld [vmem:[%s211 + $0x2d0] sm:$0xf]
        %v438 = vld [vmem:[%s211 + $0x2d4] sm:$0xf]
        %v439 = vld [vmem:[%s211 + $0x2d8] sm:$0xf]
        %v440 = vld [vmem:[%s211 + $0x2dc] sm:$0xf]
        %v441 = vld [vmem:[%s211 + $0x2e0] sm:$0xf]
        %v442 = vld [vmem:[%s211 + $0x2e4] sm:$0xf]
        %v443 = vld [vmem:[%s211 + $0x2e8] sm:$0xf]
        %v444 = vld [vmem:[%s211 + $0x2ec] sm:$0xf]
        %v445 = vld [vmem:[%s211 + $0x2f0] sm:$0xf]
        %v446 = vld [vmem:[%s211 + $0x2f4] sm:$0xf]
        %v447 = vld [vmem:[%s211 + $0x2f8] sm:$0xf]
        %v448 = vld [vmem:[%s211 + $0x2fc] sm:$0xf]
        %v449 = vld [vmem:[%s211 + $0x300] sm:$0xf]
        %v450 = vld [vmem:[%s211 + $0x304] sm:$0xf]
        %v451 = vld [vmem:[%s211 + $0x308] sm:$0xf]
        %v452 = vld [vmem:[%s211 + $0x30c] sm:$0xf]
        %v453 = vld [vmem:[%s211 + $0x310] sm:$0xf]
        %v454 = vld [vmem:[%s211 + $0x314] sm:$0xf]
        %v455 = vld [vmem:[%s211 + $0x318] sm:$0xf]
        %v456 = vld [vmem:[%s211 + $0x31c] sm:$0xf]
        %v457 = vld [vmem:[%s211 + $0x320] sm:$0xf]
        %v458 = vld [vmem:[%s211 + $0x324] sm:$0xf]
        %v459 = vld [vmem:[%s211 + $0x328] sm:$0xf]
        %v460 = vld [vmem:[%s211 + $0x32c] sm:$0xf]
        %v461 = vld [vmem:[%s211 + $0x330] sm:$0xf]
        %v462 = vld [vmem:[%s211 + $0x334] sm:$0xf]
        %v463 = vld [vmem:[%s211 + $0x338] sm:$0xf]
        %v464 = vld [vmem:[%s211 + $0x33c] sm:$0xf]
        %v465 = vld [vmem:[%s211 + $0x340] sm:$0xf]
        %v466 = vld [vmem:[%s211 + $0x344] sm:$0xf]
        %v467 = vld [vmem:[%s211 + $0x348] sm:$0xf]
        %v468 = vld [vmem:[%s211 + $0x34c] sm:$0xf]
        %v469 = vld [vmem:[%s211 + $0x350] sm:$0xf]
        %v470 = vld [vmem:[%s211 + $0x354] sm:$0xf]
        %v471 = vld [vmem:[%s211 + $0x358] sm:$0xf]
        %v472 = vld [vmem:[%s211 + $0x35c] sm:$0xf]
        %v473 = vld [vmem:[%s211 + $0x360] sm:$0xf]
        %v474 = vld [vmem:[%s211 + $0x364] sm:$0xf]
        %v475 = vld [vmem:[%s211 + $0x368] sm:$0xf]
        %v476 = vld [vmem:[%s211 + $0x36c] sm:$0xf]
        %v477 = vld [vmem:[%s211 + $0x370] sm:$0xf]
        %v478 = vld [vmem:[%s211 + $0x374] sm:$0xf]
        %v479 = vld [vmem:[%s211 + $0x378] sm:$0xf]
        %v480 = vld [vmem:[%s211 + $0x37c] sm:$0xf]
        %v481 = vld [vmem:[%s211 + $0x380] sm:$0xf]
        %v482 = vld [vmem:[%s211 + $0x384] sm:$0xf]
        %v483 = vld [vmem:[%s211 + $0x388] sm:$0xf]
        %v484 = vld [vmem:[%s211 + $0x38c] sm:$0xf]
        %v485 = vld [vmem:[%s211 + $0x390] sm:$0xf]
        %v486 = vld [vmem:[%s211 + $0x394] sm:$0xf]
        %v487 = vld [vmem:[%s211 + $0x398] sm:$0xf]
        %v488 = vld [vmem:[%s211 + $0x39c] sm:$0xf]
        %v489 = vld [vmem:[%s211 + $0x3a0] sm:$0xf]
        %v490 = vld [vmem:[%s211 + $0x3a4] sm:$0xf]
        %v491 = vld [vmem:[%s211 + $0x3a8] sm:$0xf]
        %v492 = vld [vmem:[%s211 + $0x3ac] sm:$0xf]
        %v493 = vld [vmem:[%s211 + $0x3b0] sm:$0xf]
        %v494 = vld [vmem:[%s211 + $0x3b4] sm:$0xf]
        %v495 = vld [vmem:[%s211 + $0x3b8] sm:$0xf]
        %v496 = vld [vmem:[%s211 + $0x3bc] sm:$0xf]
        %v497 = vld [vmem:[%s211 + $0x3c0] sm:$0xf]
        %v498 = vld [vmem:[%s211 + $0x3c4] sm:$0xf]
        %v499 = vld [vmem:[%s211 + $0x3c8] sm:$0xf]
        %v500 = vld [vmem:[%s211 + $0x3cc] sm:$0xf]
        %v501 = vld [vmem:[%s211 + $0x3d0] sm:$0xf]
        %v502 = vld [vmem:[%s211 + $0x3d4] sm:$0xf]
        %v503 = vld [vmem:[%s211 + $0x3d8] sm:$0xf]
        %v504 = vld [vmem:[%s211 + $0x3dc] sm:$0xf]
        %v505 = vld [vmem:[%s211 + $0x3e0] sm:$0xf]
        %v506 = vld [vmem:[%s211 + $0x3e4] sm:$0xf]
        %v507 = vld [vmem:[%s211 + $0x3e8] sm:$0xf]
        %v508 = vld [vmem:[%s211 + $0x3ec] sm:$0xf]
        %v509 = vld [vmem:[%s211 + $0x3f0] sm:$0xf]
        %v510 = vld [vmem:[%s211 + $0x3f4] sm:$0xf]
        %v511 = vld [vmem:[%s211 + $0x3f8] sm:$0xf]
        %v512 = vld [vmem:[%s211 + $0x3fc] sm:$0xf]
        %v521 = vunpack.c.l.b16 %v249
        %v522 = vunpack.c.h.b16 %v249
        %v523 = vunpack.c.l.b16 %v250
        %v524 = vunpack.c.h.b16 %v250
        %v525 = vunpack.c.l.b16 %v251
        %v526 = vunpack.c.h.b16 %v251
        %v527 = vunpack.c.l.b16 %v252
        %v528 = vunpack.c.h.b16 %v252
        %v529 = vunpack.c.l.b16 %v253
        %v530 = vunpack.c.h.b16 %v253
        %v531 = vunpack.c.l.b16 %v254
        %v532 = vunpack.c.h.b16 %v254
        %v533 = vunpack.c.l.b16 %v255
        %v534 = vunpack.c.h.b16 %v255
        %v535 = vunpack.c.l.b16 %v256
        %v536 = vunpack.c.h.b16 %v256
        %v537 = vpack.c.b16 %v521, %v521
        %v538 = vpack.c.b16 %v522, %v522
        %v539 = vpack.c.b16 %v523, %v523
        %v540 = vpack.c.b16 %v524, %v524
        %v541 = vpack.c.b16 %v525, %v525
        %v542 = vpack.c.b16 %v526, %v526
        %v543 = vpack.c.b16 %v527, %v527
        %v544 = vpack.c.b16 %v528, %v528
        %v545 = vpack.c.b16 %v529, %v529
        %v546 = vpack.c.b16 %v530, %v530
        %v547 = vpack.c.b16 %v531, %v531
        %v548 = vpack.c.b16 %v532, %v532
        %v549 = vpack.c.b16 %v533, %v533
        %v550 = vpack.c.b16 %v534, %v534
        %v551 = vpack.c.b16 %v535, %v535
        %v552 = vpack.c.b16 %v536, %v536
        %v825 = vunpack.c.l.b16 %v257
        %v826 = vunpack.c.l.b16 %v258
        %v827 = vunpack.c.l.b16 %v259
        %v828 = vunpack.c.l.b16 %v260
        %v829 = vunpack.c.l.b16 %v261
        %v830 = vunpack.c.l.b16 %v262
        %v831 = vunpack.c.l.b16 %v263
        %v832 = vunpack.c.l.b16 %v264
        %v833 = vunpack.c.l.b16 %v265
        %v834 = vunpack.c.l.b16 %v266
        %v835 = vunpack.c.l.b16 %v267
        %v836 = vunpack.c.l.b16 %v268
        %v837 = vunpack.c.l.b16 %v269
        %v838 = vunpack.c.l.b16 %v270
        %v839 = vunpack.c.l.b16 %v271
        %v840 = vunpack.c.l.b16 %v272
        %v841 = vunpack.c.l.b16 %v273
        %v842 = vunpack.c.l.b16 %v274
        %v843 = vunpack.c.l.b16 %v275
        %v844 = vunpack.c.l.b16 %v276
        %v845 = vunpack.c.l.b16 %v277
        %v846 = vunpack.c.l.b16 %v278
        %v847 = vunpack.c.l.b16 %v279
        %v848 = vunpack.c.l.b16 %v280
        %v849 = vunpack.c.l.b16 %v281
        %v850 = vunpack.c.l.b16 %v282
        %v851 = vunpack.c.l.b16 %v283
        %v852 = vunpack.c.l.b16 %v284
        %v853 = vunpack.c.l.b16 %v285
        %v854 = vunpack.c.l.b16 %v286
        %v855 = vunpack.c.l.b16 %v287
        %v856 = vunpack.c.l.b16 %v288
        %v857 = vunpack.c.l.b16 %v289
        %v858 = vunpack.c.l.b16 %v290
        %v859 = vunpack.c.l.b16 %v291
        %v860 = vunpack.c.l.b16 %v292
        %v861 = vunpack.c.l.b16 %v293
        %v862 = vunpack.c.l.b16 %v294
        %v863 = vunpack.c.l.b16 %v295
        %v864 = vunpack.c.l.b16 %v296
        %v865 = vunpack.c.l.b16 %v297
        %v866 = vunpack.c.l.b16 %v298
        %v867 = vunpack.c.l.b16 %v299
        %v868 = vunpack.c.l.b16 %v300
        %v869 = vunpack.c.l.b16 %v301
        %v870 = vunpack.c.l.b16 %v302
        %v871 = vunpack.c.l.b16 %v303
        %v872 = vunpack.c.l.b16 %v304
        %v873 = vunpack.c.l.b16 %v305
        %v874 = vunpack.c.l.b16 %v306
        %v875 = vunpack.c.l.b16 %v307
        %v876 = vunpack.c.l.b16 %v308
        %v877 = vunpack.c.l.b16 %v309
        %v878 = vunpack.c.l.b16 %v310
        %v879 = vunpack.c.l.b16 %v311
        %v880 = vunpack.c.l.b16 %v312
        %v881 = vunpack.c.l.b16 %v313
        %v882 = vunpack.c.l.b16 %v314
        %v883 = vunpack.c.l.b16 %v315
        %v884 = vunpack.c.l.b16 %v316
        %v885 = vunpack.c.l.b16 %v317
        %v886 = vunpack.c.l.b16 %v318
        %v887 = vunpack.c.l.b16 %v319
        %v888 = vunpack.c.l.b16 %v320
        %v889 = vunpack.c.l.b16 %v321
        %v890 = vunpack.c.l.b16 %v322
        %v891 = vunpack.c.l.b16 %v323
        %v892 = vunpack.c.l.b16 %v324
        %v893 = vunpack.c.l.b16 %v325
        %v894 = vunpack.c.l.b16 %v326
        %v895 = vunpack.c.l.b16 %v327
        %v896 = vunpack.c.l.b16 %v328
        %v897 = vunpack.c.l.b16 %v329
        %v898 = vunpack.c.l.b16 %v330
        %v899 = vunpack.c.l.b16 %v331
        %v900 = vunpack.c.l.b16 %v332
        %v901 = vunpack.c.l.b16 %v333
        %v902 = vunpack.c.l.b16 %v334
        %v903 = vunpack.c.l.b16 %v335
        %v904 = vunpack.c.l.b16 %v336
        %v905 = vunpack.c.l.b16 %v337
        %v906 = vunpack.c.l.b16 %v338
        %v907 = vunpack.c.l.b16 %v339
        %v908 = vunpack.c.l.b16 %v340
        %v909 = vunpack.c.l.b16 %v341
        %v910 = vunpack.c.l.b16 %v342
        %v911 = vunpack.c.l.b16 %v343
        %v912 = vunpack.c.l.b16 %v344
        %v913 = vunpack.c.l.b16 %v345
        %v914 = vunpack.c.l.b16 %v346
        %v915 = vunpack.c.l.b16 %v347
        %v916 = vunpack.c.l.b16 %v348
        %v917 = vunpack.c.l.b16 %v349
        %v918 = vunpack.c.l.b16 %v350
        %v919 = vunpack.c.l.b16 %v351
        %v920 = vunpack.c.l.b16 %v352
        %v921 = vunpack.c.l.b16 %v353
        %v922 = vunpack.c.l.b16 %v354
        %v923 = vunpack.c.l.b16 %v355
        %v924 = vunpack.c.l.b16 %v356
        %v925 = vunpack.c.l.b16 %v357
        %v926 = vunpack.c.l.b16 %v358
        %v927 = vunpack.c.l.b16 %v359
        %v928 = vunpack.c.l.b16 %v360
        %v929 = vunpack.c.l.b16 %v361
        %v930 = vunpack.c.l.b16 %v362
        %v931 = vunpack.c.l.b16 %v363
        %v932 = vunpack.c.l.b16 %v364
        %v933 = vunpack.c.l.b16 %v365
        %v934 = vunpack.c.l.b16 %v366
        %v935 = vunpack.c.l.b16 %v367
        %v936 = vunpack.c.l.b16 %v368
        %v937 = vunpack.c.l.b16 %v369
        %v938 = vunpack.c.l.b16 %v370
        %v939 = vunpack.c.l.b16 %v371
        %v940 = vunpack.c.l.b16 %v372
        %v941 = vunpack.c.l.b16 %v373
        %v942 = vunpack.c.l.b16 %v374
        %v943 = vunpack.c.l.b16 %v375
        %v944 = vunpack.c.l.b16 %v376
        %v945 = vunpack.c.l.b16 %v377
        %v946 = vunpack.c.l.b16 %v378
        %v947 = vunpack.c.l.b16 %v379
        %v948 = vunpack.c.l.b16 %v380
        %v949 = vunpack.c.l.b16 %v381
        %v950 = vunpack.c.l.b16 %v382
        %v951 = vunpack.c.l.b16 %v383
        %v952 = vunpack.c.l.b16 %v384
        %v953 = vunpack.c.l.b16 %v385
        %v954 = vunpack.c.l.b16 %v386
        %v955 = vunpack.c.l.b16 %v387
        %v956 = vunpack.c.l.b16 %v388
        %v957 = vunpack.c.l.b16 %v389
        %v958 = vunpack.c.l.b16 %v390
        %v959 = vunpack.c.l.b16 %v391
        %v960 = vunpack.c.l.b16 %v392
        %v961 = vunpack.c.l.b16 %v393
        %v962 = vunpack.c.l.b16 %v394
        %v963 = vunpack.c.l.b16 %v395
        %v964 = vunpack.c.l.b16 %v396
        %v965 = vunpack.c.l.b16 %v397
        %v966 = vunpack.c.l.b16 %v398
        %v967 = vunpack.c.l.b16 %v399
        %v968 = vunpack.c.l.b16 %v400
        %v969 = vunpack.c.l.b16 %v401
        %v970 = vunpack.c.l.b16 %v402
        %v971 = vunpack.c.l.b16 %v403
        %v972 = vunpack.c.l.b16 %v404
        %v973 = vunpack.c.l.b16 %v405
        %v974 = vunpack.c.l.b16 %v406
        %v975 = vunpack.c.l.b16 %v407
        %v976 = vunpack.c.l.b16 %v408
        %v977 = vunpack.c.l.b16 %v409
        %v978 = vunpack.c.l.b16 %v410
        %v979 = vunpack.c.l.b16 %v411
        %v980 = vunpack.c.l.b16 %v412
        %v981 = vunpack.c.l.b16 %v413
        %v982 = vunpack.c.l.b16 %v414
        %v983 = vunpack.c.l.b16 %v415
        %v984 = vunpack.c.l.b16 %v416
        %v985 = vunpack.c.l.b16 %v417
        %v986 = vunpack.c.l.b16 %v418
        %v987 = vunpack.c.l.b16 %v419
        %v988 = vunpack.c.l.b16 %v420
        %v989 = vunpack.c.l.b16 %v421
        %v990 = vunpack.c.l.b16 %v422
        %v991 = vunpack.c.l.b16 %v423
        %v992 = vunpack.c.l.b16 %v424
        %v993 = vunpack.c.l.b16 %v425
        %v994 = vunpack.c.l.b16 %v426
        %v995 = vunpack.c.l.b16 %v427
        %v996 = vunpack.c.l.b16 %v428
        %v997 = vunpack.c.l.b16 %v429
        %v998 = vunpack.c.l.b16 %v430
        %v999 = vunpack.c.l.b16 %v431
        %v1000 = vunpack.c.l.b16 %v432
        %v1001 = vunpack.c.l.b16 %v433
        %v1002 = vunpack.c.l.b16 %v434
        %v1003 = vunpack.c.l.b16 %v435
        %v1004 = vunpack.c.l.b16 %v436
        %v1005 = vunpack.c.l.b16 %v437
        %v1006 = vunpack.c.l.b16 %v438
        %v1007 = vunpack.c.l.b16 %v439
        %v1008 = vunpack.c.l.b16 %v440
        %v1009 = vunpack.c.l.b16 %v441
        %v1010 = vunpack.c.l.b16 %v442
        %v1011 = vunpack.c.l.b16 %v443
        %v1012 = vunpack.c.l.b16 %v444
        %v1013 = vunpack.c.l.b16 %v445
        %v1014 = vunpack.c.l.b16 %v446
        %v1015 = vunpack.c.l.b16 %v447
        %v1016 = vunpack.c.l.b16 %v448
        %v1017 = vunpack.c.l.b16 %v449
        %v1018 = vunpack.c.l.b16 %v450
        %v1019 = vunpack.c.l.b16 %v451
        %v1020 = vunpack.c.l.b16 %v452
        %v1021 = vunpack.c.l.b16 %v453
        %v1022 = vunpack.c.l.b16 %v454
        %v1023 = vunpack.c.l.b16 %v455
        %v1024 = vunpack.c.l.b16 %v456
        %v1025 = vunpack.c.l.b16 %v457
        %v1026 = vunpack.c.l.b16 %v458
        %v1027 = vunpack.c.l.b16 %v459
        %v1028 = vunpack.c.l.b16 %v460
        %v1029 = vunpack.c.l.b16 %v461
        %v1030 = vunpack.c.l.b16 %v462
        %v1031 = vunpack.c.l.b16 %v463
        %v1032 = vunpack.c.l.b16 %v464
        %v1033 = vunpack.c.l.b16 %v465
        %v1034 = vunpack.c.l.b16 %v466
        %v1035 = vunpack.c.l.b16 %v467
        %v1036 = vunpack.c.l.b16 %v468
        %v1037 = vunpack.c.l.b16 %v469
        %v1038 = vunpack.c.l.b16 %v470
        %v1039 = vunpack.c.l.b16 %v471
        %v1040 = vunpack.c.l.b16 %v472
        %v1041 = vunpack.c.l.b16 %v473
        %v1042 = vunpack.c.l.b16 %v474
        %v1043 = vunpack.c.l.b16 %v475
        %v1044 = vunpack.c.l.b16 %v476
        %v1045 = vunpack.c.l.b16 %v477
        %v1046 = vunpack.c.l.b16 %v478
        %v1047 = vunpack.c.l.b16 %v479
        %v1048 = vunpack.c.l.b16 %v480
        %v1049 = vunpack.c.l.b16 %v481
        %v1050 = vunpack.c.l.b16 %v482
        %v1051 = vunpack.c.l.b16 %v483
        %v1052 = vunpack.c.l.b16 %v484
        %v1053 = vunpack.c.l.b16 %v485
        %v1054 = vunpack.c.l.b16 %v486
        %v1055 = vunpack.c.l.b16 %v487
        %v1056 = vunpack.c.l.b16 %v488
        %v1057 = vunpack.c.l.b16 %v489
        %v1058 = vunpack.c.l.b16 %v490
        %v1059 = vunpack.c.l.b16 %v491
        %v1060 = vunpack.c.l.b16 %v492
        %v1061 = vunpack.c.l.b16 %v493
        %v1062 = vunpack.c.l.b16 %v494
        %v1063 = vunpack.c.l.b16 %v495
        %v1064 = vunpack.c.l.b16 %v496
        %v1065 = vunpack.c.l.b16 %v497
        %v1066 = vunpack.c.l.b16 %v498
        %v1067 = vunpack.c.l.b16 %v499
        %v1068 = vunpack.c.l.b16 %v500
        %v1069 = vunpack.c.l.b16 %v501
        %v1070 = vunpack.c.l.b16 %v502
        %v1071 = vunpack.c.l.b16 %v503
        %v1072 = vunpack.c.l.b16 %v504
        %v1073 = vunpack.c.l.b16 %v505
        %v1074 = vunpack.c.l.b16 %v506
        %v1075 = vunpack.c.l.b16 %v507
        %v1076 = vunpack.c.l.b16 %v508
        %v1077 = vunpack.c.l.b16 %v509
        %v1078 = vunpack.c.l.b16 %v510
        %v1079 = vunpack.c.l.b16 %v511
        %v1080 = vunpack.c.l.b16 %v512
        %v1081 = vpack.c.b16 %v826, %v825
        %v1082 = vpack.c.b16 %v828, %v827
        %v1083 = vpack.c.b16 %v830, %v829
        %v1084 = vpack.c.b16 %v832, %v831
        %v1085 = vpack.c.b16 %v834, %v833
        %v1086 = vpack.c.b16 %v836, %v835
        %v1087 = vpack.c.b16 %v838, %v837
        %v1088 = vpack.c.b16 %v840, %v839
        %v1089 = vpack.c.b16 %v842, %v841
        %v1090 = vpack.c.b16 %v844, %v843
        %v1091 = vpack.c.b16 %v846, %v845
        %v1092 = vpack.c.b16 %v848, %v847
        %v1093 = vpack.c.b16 %v850, %v849
        %v1094 = vpack.c.b16 %v852, %v851
        %v1095 = vpack.c.b16 %v854, %v853
        %v1096 = vpack.c.b16 %v856, %v855
        %v1097 = vpack.c.b16 %v858, %v857
        %v1098 = vpack.c.b16 %v860, %v859
        %v1099 = vpack.c.b16 %v862, %v861
        %v1100 = vpack.c.b16 %v864, %v863
        %v1101 = vpack.c.b16 %v866, %v865
        %v1102 = vpack.c.b16 %v868, %v867
        %v1103 = vpack.c.b16 %v870, %v869
        %v1104 = vpack.c.b16 %v872, %v871
        %v1105 = vpack.c.b16 %v874, %v873
        %v1106 = vpack.c.b16 %v876, %v875
        %v1107 = vpack.c.b16 %v878, %v877
        %v1108 = vpack.c.b16 %v880, %v879
        %v1109 = vpack.c.b16 %v882, %v881
        %v1110 = vpack.c.b16 %v884, %v883
        %v1111 = vpack.c.b16 %v886, %v885
        %v1112 = vpack.c.b16 %v888, %v887
        %v1113 = vpack.c.b16 %v890, %v889
        %v1114 = vpack.c.b16 %v892, %v891
        %v1115 = vpack.c.b16 %v894, %v893
        %v1116 = vpack.c.b16 %v896, %v895
        %v1117 = vpack.c.b16 %v898, %v897
        %v1118 = vpack.c.b16 %v900, %v899
        %v1119 = vpack.c.b16 %v902, %v901
        %v1120 = vpack.c.b16 %v904, %v903
        %v1121 = vpack.c.b16 %v906, %v905
        %v1122 = vpack.c.b16 %v908, %v907
        %v1123 = vpack.c.b16 %v910, %v909
        %v1124 = vpack.c.b16 %v912, %v911
        %v1125 = vpack.c.b16 %v914, %v913
        %v1126 = vpack.c.b16 %v916, %v915
        %v1127 = vpack.c.b16 %v918, %v917
        %v1128 = vpack.c.b16 %v920, %v919
        %v1129 = vpack.c.b16 %v922, %v921
        %v1130 = vpack.c.b16 %v924, %v923
        %v1131 = vpack.c.b16 %v926, %v925
        %v1132 = vpack.c.b16 %v928, %v927
        %v1133 = vpack.c.b16 %v930, %v929
        %v1134 = vpack.c.b16 %v932, %v931
        %v1135 = vpack.c.b16 %v934, %v933
        %v1136 = vpack.c.b16 %v936, %v935
        %v1137 = vpack.c.b16 %v938, %v937
        %v1138 = vpack.c.b16 %v940, %v939
        %v1139 = vpack.c.b16 %v942, %v941
        %v1140 = vpack.c.b16 %v944, %v943
        %v1141 = vpack.c.b16 %v946, %v945
        %v1142 = vpack.c.b16 %v948, %v947
        %v1143 = vpack.c.b16 %v950, %v949
        %v1144 = vpack.c.b16 %v952, %v951
        %v1145 = vpack.c.b16 %v954, %v953
        %v1146 = vpack.c.b16 %v956, %v955
        %v1147 = vpack.c.b16 %v958, %v957
        %v1148 = vpack.c.b16 %v960, %v959
        %v1149 = vpack.c.b16 %v962, %v961
        %v1150 = vpack.c.b16 %v964, %v963
        %v1151 = vpack.c.b16 %v966, %v965
        %v1152 = vpack.c.b16 %v968, %v967
        %v1153 = vpack.c.b16 %v970, %v969
        %v1154 = vpack.c.b16 %v972, %v971
        %v1155 = vpack.c.b16 %v974, %v973
        %v1156 = vpack.c.b16 %v976, %v975
        %v1157 = vpack.c.b16 %v978, %v977
        %v1158 = vpack.c.b16 %v980, %v979
        %v1159 = vpack.c.b16 %v982, %v981
        %v1160 = vpack.c.b16 %v984, %v983
        %v1161 = vpack.c.b16 %v986, %v985
        %v1162 = vpack.c.b16 %v988, %v987
        %v1163 = vpack.c.b16 %v990, %v989
        %v1164 = vpack.c.b16 %v992, %v991
        %v1165 = vpack.c.b16 %v994, %v993
        %v1166 = vpack.c.b16 %v996, %v995
        %v1167 = vpack.c.b16 %v998, %v997
        %v1168 = vpack.c.b16 %v1000, %v999
        %v1169 = vpack.c.b16 %v1002, %v1001
        %v1170 = vpack.c.b16 %v1004, %v1003
        %v1171 = vpack.c.b16 %v1006, %v1005
        %v1172 = vpack.c.b16 %v1008, %v1007
        %v1173 = vpack.c.b16 %v1010, %v1009
        %v1174 = vpack.c.b16 %v1012, %v1011
        %v1175 = vpack.c.b16 %v1014, %v1013
        %v1176 = vpack.c.b16 %v1016, %v1015
        %v1177 = vpack.c.b16 %v1018, %v1017
        %v1178 = vpack.c.b16 %v1020, %v1019
        %v1179 = vpack.c.b16 %v1022, %v1021
        %v1180 = vpack.c.b16 %v1024, %v1023
        %v1181 = vpack.c.b16 %v1026, %v1025
        %v1182 = vpack.c.b16 %v1028, %v1027
        %v1183 = vpack.c.b16 %v1030, %v1029
        %v1184 = vpack.c.b16 %v1032, %v1031
        %v1185 = vpack.c.b16 %v1034, %v1033
        %v1186 = vpack.c.b16 %v1036, %v1035
        %v1187 = vpack.c.b16 %v1038, %v1037
        %v1188 = vpack.c.b16 %v1040, %v1039
        %v1189 = vpack.c.b16 %v1042, %v1041
        %v1190 = vpack.c.b16 %v1044, %v1043
        %v1191 = vpack.c.b16 %v1046, %v1045
        %v1192 = vpack.c.b16 %v1048, %v1047
        %v1193 = vpack.c.b16 %v1050, %v1049
        %v1194 = vpack.c.b16 %v1052, %v1051
        %v1195 = vpack.c.b16 %v1054, %v1053
        %v1196 = vpack.c.b16 %v1056, %v1055
        %v1197 = vpack.c.b16 %v1058, %v1057
        %v1198 = vpack.c.b16 %v1060, %v1059
        %v1199 = vpack.c.b16 %v1062, %v1061
        %v1200 = vpack.c.b16 %v1064, %v1063
        %v1201 = vpack.c.b16 %v1066, %v1065
        %v1202 = vpack.c.b16 %v1068, %v1067
        %v1203 = vpack.c.b16 %v1070, %v1069
        %v1204 = vpack.c.b16 %v1072, %v1071
        %v1205 = vpack.c.b16 %v1074, %v1073
        %v1206 = vpack.c.b16 %v1076, %v1075
        %v1207 = vpack.c.b16 %v1078, %v1077
        %v1208 = vpack.c.b16 %v1080, %v1079
        %1337 = vmatprep.subr.bf16.mxu0 0
        %1338 = vmatpush1.bf16.msra.mxu0 %v1081
        %1339 = vmatprep.subr.bf16.mxu0 0
        %1340 = vmatpush1.bf16.msra.mxu0 %v1082
        %1341 = vmatprep.subr.bf16.mxu0 0
        %1342 = vmatpush1.bf16.msra.mxu0 %v1083
        %1343 = vmatprep.subr.bf16.mxu0 0
        %1344 = vmatpush1.bf16.msra.mxu0 %v1084
        %1345 = vmatprep.subr.bf16.mxu0 0
        %1346 = vmatpush1.bf16.msra.mxu0 %v1085
        %1347 = vmatprep.subr.bf16.mxu0 0
        %1348 = vmatpush1.bf16.msra.mxu0 %v1086
        %1349 = vmatprep.subr.bf16.mxu0 0
        %1350 = vmatpush1.bf16.msra.mxu0 %v1087
        %1351 = vmatprep.subr.bf16.mxu0 0
        %1352 = vmatpush1.bf16.msra.mxu0 %v1088
        %1353 = vmatprep.subr.bf16.mxu0 0
        %1354 = vmatpush1.bf16.msra.mxu0 %v1089
        %1355 = vmatprep.subr.bf16.mxu0 0
        %1356 = vmatpush1.bf16.msra.mxu0 %v1090
        %1357 = vmatprep.subr.bf16.mxu0 0
        %1358 = vmatpush1.bf16.msra.mxu0 %v1091
        %1359 = vmatprep.subr.bf16.mxu0 0
        %1360 = vmatpush1.bf16.msra.mxu0 %v1092
        %1361 = vmatprep.subr.bf16.mxu0 0
        %1362 = vmatpush1.bf16.msra.mxu0 %v1093
        %1363 = vmatprep.subr.bf16.mxu0 0
        %1364 = vmatpush1.bf16.msra.mxu0 %v1094
        %1365 = vmatprep.subr.bf16.mxu0 0
        %1366 = vmatpush1.bf16.msra.mxu0 %v1095
        %1367 = vmatprep.subr.bf16.mxu0 0
        %1368 = vmatpush1.bf16.msra.mxu0 %v1096
        %1369 = vmatprep.mubr.bf16.mxu0 %v538
        %1370 = vmatmul.mubr.bf16.gmra.mrb[0].mxu0 %v537
        %v1371 = vpop.f32.mrb[0].mxu0
        %v1372 = vadd.f32 0.0, %v1371
        %v1373 = vpop.f32.mrb[0].mxu0
        %v1374 = vpop.f32.mrb[0].mxu0
        %v1375 = vpop.f32.mrb[0].mxu0
        %1376 = vdwg.mxu0
        %1377 = vmatprep.subr.bf16.mxu0 0
        %1378 = vmatpush1.bf16.msra.mxu0 %v1097
        %1379 = vmatprep.subr.bf16.mxu0 0
        %1380 = vmatpush1.bf16.msra.mxu0 %v1098
        %1381 = vmatprep.subr.bf16.mxu0 0
        %1382 = vmatpush1.bf16.msra.mxu0 %v1099
        %1383 = vmatprep.subr.bf16.mxu0 0
        %1384 = vmatpush1.bf16.msra.mxu0 %v1100
        %1385 = vmatprep.subr.bf16.mxu0 0
        %1386 = vmatpush1.bf16.msra.mxu0 %v1101
        %1387 = vmatprep.subr.bf16.mxu0 0
        %1388 = vmatpush1.bf16.msra.mxu0 %v1102
        %1389 = vmatprep.subr.bf16.mxu0 0
        %1390 = vmatpush1.bf16.msra.mxu0 %v1103
        %1391 = vmatprep.subr.bf16.mxu0 0
        %1392 = vmatpush1.bf16.msra.mxu0 %v1104
        %1393 = vmatprep.subr.bf16.mxu0 0
        %1394 = vmatpush1.bf16.msra.mxu0 %v1105
        %1395 = vmatprep.subr.bf16.mxu0 0
        %1396 = vmatpush1.bf16.msra.mxu0 %v1106
        %1397 = vmatprep.subr.bf16.mxu0 0
        %1398 = vmatpush1.bf16.msra.mxu0 %v1107
        %1399 = vmatprep.subr.bf16.mxu0 0
        %1400 = vmatpush1.bf16.msra.mxu0 %v1108
        %1401 = vmatprep.subr.bf16.mxu0 0
        %1402 = vmatpush1.bf16.msra.mxu0 %v1109
        %1403 = vmatprep.subr.bf16.mxu0 0
        %1404 = vmatpush1.bf16.msra.mxu0 %v1110
        %1405 = vmatprep.subr.bf16.mxu0 0
        %1406 = vmatpush1.bf16.msra.mxu0 %v1111
        %1407 = vmatprep.subr.bf16.mxu0 0
        %1408 = vmatpush1.bf16.msra.mxu0 %v1112
        %1409 = vmatprep.mubr.bf16.mxu0 %v540
        %1410 = vmatmul.mubr.bf16.gmra.mrb[0].mxu0 %v539
        %v1411 = vpop.f32.mrb[0].mxu0
        %v1412 = vadd.f32 %v1372, %v1411
        %v1413 = vpop.f32.mrb[0].mxu0
        %v1414 = vpop.f32.mrb[0].mxu0
        %v1415 = vpop.f32.mrb[0].mxu0
        %1416 = vdwg.mxu0
        %1417 = vmatprep.subr.bf16.mxu0 0
        %1418 = vmatpush1.bf16.msra.mxu0 %v1113
        %1419 = vmatprep.subr.bf16.mxu0 0
        %1420 = vmatpush1.bf16.msra.mxu0 %v1114
        %1421 = vmatprep.subr.bf16.mxu0 0
        %1422 = vmatpush1.bf16.msra.mxu0 %v1115
        %1423 = vmatprep.subr.bf16.mxu0 0
        %1424 = vmatpush1.bf16.msra.mxu0 %v1116
        %1425 = vmatprep.subr.bf16.mxu0 0
        %1426 = vmatpush1.bf16.msra.mxu0 %v1117
        %1427 = vmatprep.subr.bf16.mxu0 0
        %1428 = vmatpush1.bf16.msra.mxu0 %v1118
        %1429 = vmatprep.subr.bf16.mxu0 0
        %1430 = vmatpush1.bf16.msra.mxu0 %v1119
        %1431 = vmatprep.subr.bf16.mxu0 0
        %1432 = vmatpush1.bf16.msra.mxu0 %v1120
        %1433 = vmatprep.subr.bf16.mxu0 0
        %1434 = vmatpush1.bf16.msra.mxu0 %v1121
        %1435 = vmatprep.subr.bf16.mxu0 0
        %1436 = vmatpush1.bf16.msra.mxu0 %v1122
        %1437 = vmatprep.subr.bf16.mxu0 0
        %1438 = vmatpush1.bf16.msra.mxu0 %v1123
        %1439 = vmatprep.subr.bf16.mxu0 0
        %1440 = vmatpush1.bf16.msra.mxu0 %v1124
        %1441 = vmatprep.subr.bf16.mxu0 0
        %1442 = vmatpush1.bf16.msra.mxu0 %v1125
        %1443 = vmatprep.subr.bf16.mxu0 0
        %1444 = vmatpush1.bf16.msra.mxu0 %v1126
        %1445 = vmatprep.subr.bf16.mxu0 0
        %1446 = vmatpush1.bf16.msra.mxu0 %v1127
        %1447 = vmatprep.subr.bf16.mxu0 0
        %1448 = vmatpush1.bf16.msra.mxu0 %v1128
        %1449 = vmatprep.mubr.bf16.mxu0 %v542
        %1450 = vmatmul.mubr.bf16.gmra.mrb[0].mxu0 %v541
        %v1451 = vpop.f32.mrb[0].mxu0
        %v1452 = vadd.f32 %v1412, %v1451
        %v1453 = vpop.f32.mrb[0].mxu0
        %v1454 = vpop.f32.mrb[0].mxu0
        %v1455 = vpop.f32.mrb[0].mxu0
        %1456 = vdwg.mxu0
        %1457 = vmatprep.subr.bf16.mxu0 0
        %1458 = vmatpush1.bf16.msra.mxu0 %v1129
        %1459 = vmatprep.subr.bf16.mxu0 0
        %1460 = vmatpush1.bf16.msra.mxu0 %v1130
        %1461 = vmatprep.subr.bf16.mxu0 0
        %1462 = vmatpush1.bf16.msra.mxu0 %v1131
        %1463 = vmatprep.subr.bf16.mxu0 0
        %1464 = vmatpush1.bf16.msra.mxu0 %v1132
        %1465 = vmatprep.subr.bf16.mxu0 0
        %1466 = vmatpush1.bf16.msra.mxu0 %v1133
        %1467 = vmatprep.subr.bf16.mxu0 0
        %1468 = vmatpush1.bf16.msra.mxu0 %v1134
        %1469 = vmatprep.subr.bf16.mxu0 0
        %1470 = vmatpush1.bf16.msra.mxu0 %v1135
        %1471 = vmatprep.subr.bf16.mxu0 0
        %1472 = vmatpush1.bf16.msra.mxu0 %v1136
        %1473 = vmatprep.subr.bf16.mxu0 0
        %1474 = vmatpush1.bf16.msra.mxu0 %v1137
        %1475 = vmatprep.subr.bf16.mxu0 0
        %1476 = vmatpush1.bf16.msra.mxu0 %v1138
        %1477 = vmatprep.subr.bf16.mxu0 0
        %1478 = vmatpush1.bf16.msra.mxu0 %v1139
        %1479 = vmatprep.subr.bf16.mxu0 0
        %1480 = vmatpush1.bf16.msra.mxu0 %v1140
        %1481 = vmatprep.subr.bf16.mxu0 0
        %1482 = vmatpush1.bf16.msra.mxu0 %v1141
        %1483 = vmatprep.subr.bf16.mxu0 0
        %1484 = vmatpush1.bf16.msra.mxu0 %v1142
        %1485 = vmatprep.subr.bf16.mxu0 0
        %1486 = vmatpush1.bf16.msra.mxu0 %v1143
        %1487 = vmatprep.subr.bf16.mxu0 0
        %1488 = vmatpush1.bf16.msra.mxu0 %v1144
        %1489 = vmatprep.mubr.bf16.mxu0 %v544
        %1490 = vmatmul.mubr.bf16.gmra.mrb[0].mxu0 %v543
        %v1491 = vpop.f32.mrb[0].mxu0
        %v1492 = vadd.f32 %v1452, %v1491
        %v1493 = vpop.f32.mrb[0].mxu0
        %v1494 = vpop.f32.mrb[0].mxu0
        %v1495 = vpop.f32.mrb[0].mxu0
        %1496 = vdwg.mxu0
        %1497 = vmatprep.subr.bf16.mxu0 0
        %1498 = vmatpush1.bf16.msra.mxu0 %v1145
        %1499 = vmatprep.subr.bf16.mxu0 0
        %1500 = vmatpush1.bf16.msra.mxu0 %v1146
        %1501 = vmatprep.subr.bf16.mxu0 0
        %1502 = vmatpush1.bf16.msra.mxu0 %v1147
        %1503 = vmatprep.subr.bf16.mxu0 0
        %1504 = vmatpush1.bf16.msra.mxu0 %v1148
        %1505 = vmatprep.subr.bf16.mxu0 0
        %1506 = vmatpush1.bf16.msra.mxu0 %v1149
        %1507 = vmatprep.subr.bf16.mxu0 0
        %1508 = vmatpush1.bf16.msra.mxu0 %v1150
        %1509 = vmatprep.subr.bf16.mxu0 0
        %1510 = vmatpush1.bf16.msra.mxu0 %v1151
        %1511 = vmatprep.subr.bf16.mxu0 0
        %1512 = vmatpush1.bf16.msra.mxu0 %v1152
        %1513 = vmatprep.subr.bf16.mxu0 0
        %1514 = vmatpush1.bf16.msra.mxu0 %v1153
        %1515 = vmatprep.subr.bf16.mxu0 0
        %1516 = vmatpush1.bf16.msra.mxu0 %v1154
        %1517 = vmatprep.subr.bf16.mxu0 0
        %1518 = vmatpush1.bf16.msra.mxu0 %v1155
        %1519 = vmatprep.subr.bf16.mxu0 0
        %1520 = vmatpush1.bf16.msra.mxu0 %v1156
        %1521 = vmatprep.subr.bf16.mxu0 0
        %1522 = vmatpush1.bf16.msra.mxu0 %v1157
        %1523 = vmatprep.subr.bf16.mxu0 0
        %1524 = vmatpush1.bf16.msra.mxu0 %v1158
        %1525 = vmatprep.subr.bf16.mxu0 0
        %1526 = vmatpush1.bf16.msra.mxu0 %v1159
        %1527 = vmatprep.subr.bf16.mxu0 0
        %1528 = vmatpush1.bf16.msra.mxu0 %v1160
        %1529 = vmatprep.mubr.bf16.mxu0 %v546
        %1530 = vmatmul.mubr.bf16.gmra.mrb[0].mxu0 %v545
        %v1531 = vpop.f32.mrb[0].mxu0
        %v1532 = vadd.f32 %v1492, %v1531
        %v1533 = vpop.f32.mrb[0].mxu0
        %v1534 = vpop.f32.mrb[0].mxu0
        %v1535 = vpop.f32.mrb[0].mxu0
        %1536 = vdwg.mxu0
        %1537 = vmatprep.subr.bf16.mxu0 0
        %1538 = vmatpush1.bf16.msra.mxu0 %v1161
        %1539 = vmatprep.subr.bf16.mxu0 0
        %1540 = vmatpush1.bf16.msra.mxu0 %v1162
        %1541 = vmatprep.subr.bf16.mxu0 0
        %1542 = vmatpush1.bf16.msra.mxu0 %v1163
        %1543 = vmatprep.subr.bf16.mxu0 0
        %1544 = vmatpush1.bf16.msra.mxu0 %v1164
        %1545 = vmatprep.subr.bf16.mxu0 0
        %1546 = vmatpush1.bf16.msra.mxu0 %v1165
        %1547 = vmatprep.subr.bf16.mxu0 0
        %1548 = vmatpush1.bf16.msra.mxu0 %v1166
        %1549 = vmatprep.subr.bf16.mxu0 0
        %1550 = vmatpush1.bf16.msra.mxu0 %v1167
        %1551 = vmatprep.subr.bf16.mxu0 0
        %1552 = vmatpush1.bf16.msra.mxu0 %v1168
        %1553 = vmatprep.subr.bf16.mxu0 0
        %1554 = vmatpush1.bf16.msra.mxu0 %v1169
        %1555 = vmatprep.subr.bf16.mxu0 0
        %1556 = vmatpush1.bf16.msra.mxu0 %v1170
        %1557 = vmatprep.subr.bf16.mxu0 0
        %1558 = vmatpush1.bf16.msra.mxu0 %v1171
        %1559 = vmatprep.subr.bf16.mxu0 0
        %1560 = vmatpush1.bf16.msra.mxu0 %v1172
        %1561 = vmatprep.subr.bf16.mxu0 0
        %1562 = vmatpush1.bf16.msra.mxu0 %v1173
        %1563 = vmatprep.subr.bf16.mxu0 0
        %1564 = vmatpush1.bf16.msra.mxu0 %v1174
        %1565 = vmatprep.subr.bf16.mxu0 0
        %1566 = vmatpush1.bf16.msra.mxu0 %v1175
        %1567 = vmatprep.subr.bf16.mxu0 0
        %1568 = vmatpush1.bf16.msra.mxu0 %v1176
        %1569 = vmatprep.mubr.bf16.mxu0 %v548
        %1570 = vmatmul.mubr.bf16.gmra.mrb[0].mxu0 %v547
        %v1571 = vpop.f32.mrb[0].mxu0
        %v1572 = vadd.f32 %v1532, %v1571
        %v1573 = vpop.f32.mrb[0].mxu0
        %v1574 = vpop.f32.mrb[0].mxu0
        %v1575 = vpop.f32.mrb[0].mxu0
        %1576 = vdwg.mxu0
        %1577 = vmatprep.subr.bf16.mxu0 0
        %1578 = vmatpush1.bf16.msra.mxu0 %v1177
        %1579 = vmatprep.subr.bf16.mxu0 0
        %1580 = vmatpush1.bf16.msra.mxu0 %v1178
        %1581 = vmatprep.subr.bf16.mxu0 0
        %1582 = vmatpush1.bf16.msra.mxu0 %v1179
        %1583 = vmatprep.subr.bf16.mxu0 0
        %1584 = vmatpush1.bf16.msra.mxu0 %v1180
        %1585 = vmatprep.subr.bf16.mxu0 0
        %1586 = vmatpush1.bf16.msra.mxu0 %v1181
        %1587 = vmatprep.subr.bf16.mxu0 0
        %1588 = vmatpush1.bf16.msra.mxu0 %v1182
        %1589 = vmatprep.subr.bf16.mxu0 0
        %1590 = vmatpush1.bf16.msra.mxu0 %v1183
        %1591 = vmatprep.subr.bf16.mxu0 0
        %1592 = vmatpush1.bf16.msra.mxu0 %v1184
        %1593 = vmatprep.subr.bf16.mxu0 0
        %1594 = vmatpush1.bf16.msra.mxu0 %v1185
        %1595 = vmatprep.subr.bf16.mxu0 0
        %1596 = vmatpush1.bf16.msra.mxu0 %v1186
        %1597 = vmatprep.subr.bf16.mxu0 0
        %1598 = vmatpush1.bf16.msra.mxu0 %v1187
        %1599 = vmatprep.subr.bf16.mxu0 0
        %1600 = vmatpush1.bf16.msra.mxu0 %v1188
        %1601 = vmatprep.subr.bf16.mxu0 0
        %1602 = vmatpush1.bf16.msra.mxu0 %v1189
        %1603 = vmatprep.subr.bf16.mxu0 0
        %1604 = vmatpush1.bf16.msra.mxu0 %v1190
        %1605 = vmatprep.subr.bf16.mxu0 0
        %1606 = vmatpush1.bf16.msra.mxu0 %v1191
        %1607 = vmatprep.subr.bf16.mxu0 0
        %1608 = vmatpush1.bf16.msra.mxu0 %v1192
        %1609 = vmatprep.mubr.bf16.mxu0 %v550
        %1610 = vmatmul.mubr.bf16.gmra.mrb[0].mxu0 %v549
        %v1611 = vpop.f32.mrb[0].mxu0
        %v1612 = vadd.f32 %v1572, %v1611
        %v1613 = vpop.f32.mrb[0].mxu0
        %v1614 = vpop.f32.mrb[0].mxu0
        %v1615 = vpop.f32.mrb[0].mxu0
        %1616 = vdwg.mxu0
        %1617 = vmatprep.subr.bf16.mxu0 0
        %1618 = vmatpush1.bf16.msra.mxu0 %v1193
        %1619 = vmatprep.subr.bf16.mxu0 0
        %1620 = vmatpush1.bf16.msra.mxu0 %v1194
        %1621 = vmatprep.subr.bf16.mxu0 0
        %1622 = vmatpush1.bf16.msra.mxu0 %v1195
        %1623 = vmatprep.subr.bf16.mxu0 0
        %1624 = vmatpush1.bf16.msra.mxu0 %v1196
        %1625 = vmatprep.subr.bf16.mxu0 0
        %1626 = vmatpush1.bf16.msra.mxu0 %v1197
        %1627 = vmatprep.subr.bf16.mxu0 0
        %1628 = vmatpush1.bf16.msra.mxu0 %v1198
        %1629 = vmatprep.subr.bf16.mxu0 0
        %1630 = vmatpush1.bf16.msra.mxu0 %v1199
        %1631 = vmatprep.subr.bf16.mxu0 0
        %1632 = vmatpush1.bf16.msra.mxu0 %v1200
        %1633 = vmatprep.subr.bf16.mxu0 0
        %1634 = vmatpush1.bf16.msra.mxu0 %v1201
        %1635 = vmatprep.subr.bf16.mxu0 0
        %1636 = vmatpush1.bf16.msra.mxu0 %v1202
        %1637 = vmatprep.subr.bf16.mxu0 0
        %1638 = vmatpush1.bf16.msra.mxu0 %v1203
        %1639 = vmatprep.subr.bf16.mxu0 0
        %1640 = vmatpush1.bf16.msra.mxu0 %v1204
        %1641 = vmatprep.subr.bf16.mxu0 0
        %1642 = vmatpush1.bf16.msra.mxu0 %v1205
        %1643 = vmatprep.subr.bf16.mxu0 0
        %1644 = vmatpush1.bf16.msra.mxu0 %v1206
        %1645 = vmatprep.subr.bf16.mxu0 0
        %1646 = vmatpush1.bf16.msra.mxu0 %v1207
        %1647 = vmatprep.subr.bf16.mxu0 0
        %1648 = vmatpush1.bf16.msra.mxu0 %v1208
        %1649 = vmatprep.mubr.bf16.mxu0 %v552
        %1650 = vmatmul.mubr.bf16.gmra.mrb[0].mxu0 %v551
        %v1651 = vpop.f32.mrb[0].mxu0
        %v1652 = vadd.f32 %v1612, %v1651
        %v1653 = vpop.f32.mrb[0].mxu0
        %v1654 = vpop.f32.mrb[0].mxu0
        %v1655 = vpop.f32.mrb[0].mxu0
        %1656 = vdwg.mxu0
        %v1657 = vadd.f32 %v248, %v1652
        %1658 = vst [vmem:[#allocation2] sm:$0xff] %v1657
        // Predicated region
        $region45: #{tpu_custom_call.1} parent=31 // pred_check
          %p1659 = pneg %p243
        $region46: #{tpu_custom_call.1} parent=31 // pred_check_branch
          %1661 = sbr.rel (%p1659) target = $region48
        $region47: #{tpu_custom_call.1} parent=31 // pred_region
          %v1662 = vld [vmem:[#allocation2] sm:$0xff]
          %v1663 = vld [vmem:[%s241] sm:$0x1]
          %v1665 = vlaneseq
          %v1666 = vshrl.u32 %v1665, 7
          %v1667 = vsub.s32 0, %v1666
          %v1668 = vrot.slane %v1663, %v1667
          %v1670 = vadd.f32 %v1662, %v1668
          %v1671 = vmax.f32 %v1670, 0.0
          %v1672 = vpack.c.bf16 %v1671, %v1671
          %1673 = vst [vmem:[%s236] sm:$0xf] %v1672
        $region48: #{tpu_custom_call.1} parent=31 // pred_fallthru
          _
        %s1674 = sand.u32 %s121, 1
        %s1675 = scalar_lea.sflag [#allocation5], %s1674
        %s1676 = sand.u32 %s121, 1
        %s1677 = smul.addr %s1676, 4
        %s1678 = scalar_lea.vmem [#allocation8], %s1677
        // Predicated region
        $region49: #{tpu_custom_call.1} parent=31 // pred_check
          %p1679 = pneg %p131
        $region50: #{tpu_custom_call.1} parent=31 // pred_check_branch
          %1681 = sbr.rel (%p1679) target = $region52
        $region51: #{tpu_custom_call.1} parent=31 // pred_region
          %s1683 = ssub.s32 64, 64
          %1684 = vsyncadd %s1675, %s1683
          %s1685 = smul.addr %s25, 64
          %s1686 = scalar_lea.hbm %s3, %s1685
          %s1688 = sshll.u32 %s1678, 4
          %s1689 = int_to_ptr.vmem [resolvable:$true] %s1688
          %1691 = dma.vmem_to_hbm [thread:$0]  %s1689, 64, %s1686, %s1675
        $region52: #{tpu_custom_call.1} parent=31 // pred_fallthru
          _
      $region32: #{tpu_custom_call.1} parent=5 // pred_fallthru
        _
      %p1692 = scmp.le.s32.totalorder 2, %s16
      // Predicated region
      $region53: #{tpu_custom_call.1} parent=5 // pred_check
        %p1693 = pneg %p1692
      $region54: #{tpu_custom_call.1} parent=5 // pred_check_branch
        %1695 = sbr.rel (%p1693) target = $region56
      $region55: #{tpu_custom_call.1} parent=5 // pred_region
        %s1696 = ssub.s32 %s16, 2
        // Predicated region
        $region57: #{tpu_custom_call.1} parent=55 // pred_check
          %p1697 = pneg %p137
        $region58: #{tpu_custom_call.1} parent=55 // pred_check_branch
          %1699 = sbr.rel (%p1697) target = $region60
        $region59: #{tpu_custom_call.1} parent=55 // pred_region
          %s1700 = sand.u32 %s122, 1
          %s1701 = scalar_lea.sflag [#allocation5], %s1700
          %s1702 = sand.u32 %s122, 1
          %s1703 = smul.addr %s1702, 4
          %s1704 = scalar_lea.vmem [#allocation8], %s1703
          %1705 = dma.done %s1701, 64
        $region60: #{tpu_custom_call.1} parent=55 // pred_fallthru
          _
      $region56: #{tpu_custom_call.1} parent=5 // pred_fallthru
        _
    $region6: #{tpu_custom_call.1} parent=1 // loop_footer
      %s20 = sadd.s32 1, %s16
    $region7: #{tpu_custom_call.1} parent=1 // loop_footer_branch
      %15 = sbr.rel target = $region3
    $region8: #{tpu_custom_call.1} parent=1 // loop_exit
      _
    %1706 = vsyncpa [#allocation4], 1
    %s1707 = scalar_lea.sflag [#allocation4], 1
    %1708 = vsyncpa %s1707, 1
    %1709 = vsyncpa [#allocation7], 1
    %s1710 = scalar_lea.sflag [#allocation7], 1
    %1711 = vsyncpa %s1710, 1
    %1712 = vsyncpa [#allocation5], 1
    %s1713 = scalar_lea.sflag [#allocation5], 1
    %1714 = vsyncpa %s1713, 1

</llo_original>
